<compile_context>
chip_gen: v6e
topology: v6e:2x2x1
jax: 0.10.0
libtpu: 0.0.40
codegen_flags: <defaults>
</compile_context>

<pallas_src>
import functools
import math

import jax
import jax.numpy as jnp
from jax import lax
from jax.experimental import pallas as pl
from jax.experimental.pallas import tpu as pltpu

LANE = 128
_F32 = 4  # bytes


def _round_up(x, m):
    return (x + m - 1) // m * m


def _lane_pad(c):
    return _round_up(max(int(c), 1), LANE)


def _gelu_exact(x):
    """Exact (erf-based) GELU, matching nn.GELU() defaults.

    erf via Abramowitz & Stegun 7.1.26 (abs err ~1.5e-7), rewritten as
        gelu(x) = 0.5*(x + |x|) - 0.5*|x| * poly(t) * exp(-u^2),  u = x/sqrt(2)
    which removes the sign/select of the textbook form.  The reciprocal and
    exp lower to the EUP, keeping VALU slots free for the dwconv stencil.
    """
    a1, a2, a3, a4, a5 = 0.254829592, -0.284496736, 1.421413741, -1.453152027, 1.061405429
    p = 0.3275911
    u = x * (1.0 / math.sqrt(2.0))
    au = jnp.abs(u)
    ax = au * math.sqrt(2.0)                       # == |x|
    t = pl.reciprocal(1.0 + p * au)                # exact: keeps 1e-4 tolerance
    poly = t * (a1 + t * (a2 + t * (a3 + t * (a4 + t * a5))))
    return 0.5 * (x + ax) - (0.5 * ax) * (poly * jnp.exp(-(au * au)))


def cffn_kernel(xc_ref, xu_ref, xd_ref, w1_ref, b1_ref, wd_ref, bd_ref,
                w2_ref, b2_ref, o_ref, *, W, TH, bf16_mxu):
    Nc = TH * W                 # tokens (whole image rows) produced by this tile
    Nh = Nc + 2 * W             # plus a one-row halo above and below

    i = pl.program_id(1)
    nt = pl.num_programs(1)

    # ---- haloed input block --------------------------------------------------
    # One (Nh, C) copy; the halo rows arrive via two clamped one-row BlockSpecs.
    xh = jnp.concatenate([xu_ref[0], xc_ref[0], xd_ref[0]], axis=0)    # (Nh, C)

    # ---- conv1 (1x1) = matmul over channels ----------------------------------
    w1 = w1_ref[...]
    if bf16_mxu:
        xh = xh.astype(jnp.bfloat16)
        w1 = w1.astype(jnp.bfloat16)
    h = jnp.dot(xh, w1, preferred_element_type=jnp.float32) + b1_ref[...]

    # Halo rows outside the image are the dwconv's zero padding: zero them
    # *after* the bias add (the conv zero-pads the conv1 output feature map).
    row = lax.broadcasted_iota(jnp.int32, (Nh, 1), 0)
    halo_valid = ((row >= W) | (i > 0)) & ((row < Nc + W) | (i < nt - 1))
    h = jnp.where(halo_valid, h, 0.0)

    col = row % W               # image column of every haloed token row

    # ---- dwconv (3x3 depthwise, padding=1) ------------------------------------
    # Outer loop over column shift dj: one XLU roll + one column mask per dj;
    # inner loop over row shift di: sublane-aligned static slices (W % 8 == 0).
    # Tap weights stay as (1, Ch) sublane-broadcast operands (never materialized
    # at (Nc, Ch)); the bias is folded into the first tap.
    wdv = wd_ref[...]                                    # (9, Ch)
    acc = None
    for kj, dj in enumerate((-1, 0, 1)):
        if dj == 0:
            hs = h
        else:
            hs = pltpu.roll(h, (-dj) % Nh, axis=0)       # hs[m] = h[m + dj]
            if dj < 0:
                hs = jnp.where(col >= 1, hs, 0.0)        # no left neighbour in col 0
            else:
                hs = jnp.where(col <= W - 2, hs, 0.0)    # no right neighbour in col W-1
        for ki, di in enumerate((-1, 0, 1)):
            k = ki * 3 + kj
            start = W + di * W                           # 0, W, 2W: sublane-aligned
            term = hs[start:start + Nc, :] * wdv[k:k + 1, :]
            acc = (term + bd_ref[...]) if acc is None else (acc + term)

    # ---- GELU (exact) ----------------------------------------------------------
    g = _gelu_exact(acc)

    # ---- conv2 (1x1) = matmul over channels ------------------------------------
    w2 = w2_ref[...]
    if bf16_mxu:
        g = g.astype(jnp.bfloat16)
        w2 = w2.astype(jnp.bfloat16)
    y = jnp.dot(g, w2, preferred_element_type=jnp.float32) + b2_ref[...]
    o_ref[0] = y.astype(o_ref.dtype)


# --------------------------- tiling / VMEM budgeting -------------------------
def _vmem_bytes_estimate(TH, W, C, Ch):
    """Rough per-step VMEM footprint (VMEM block buffers are lane-padded)."""
    Nc, Nh = TH * W, TH * W + 2 * W
    CPl, ChPl = _lane_pad(C), _lane_pad(Ch)
    # double-buffered pipeline blocks: centre + 2 halo inputs + output
    blocks = 2 * ((Nc + 2 * W) * CPl + Nc * CPl)
    # weights / biases (double-buffered, tiny)
    blocks += 2 * (2 * CPl * ChPl + 9 * ChPl + 2 * ChPl + 2 * CPl)
    # live in-kernel intermediates: xh, h, rolled copy, acc + GELU temporaries
    inter = Nh * CPl + 2 * Nh * ChPl + 5 * Nc * ChPl
    return (blocks + inter) * _F32


def _vmem_budget_bytes():
    """~60% of this generation's VMEM (v5e/v6e: 128 MiB, v7x: 64 MiB)."""
    cap = 64 * 1024 * 1024
    try:
        info = pltpu.get_tpu_info()
        cap = int(getattr(info, "vmem_capacity_bytes", cap) or cap)
    except Exception:
        pass
    return int(cap * 0.6)


def _choose_row_tile(B, H, W, C, Ch, *, target_tokens=1024, min_steps=8):
    """Largest row tile that (a) fits the generation's VMEM budget, (b) stays
    near the >=1024-token HBM-efficiency sweet spot, and (c) leaves >= ~8 grid
    steps so the pipeline and (on v7x) both TensorCores stay busy."""
    budget = _vmem_budget_bytes()
    divs = [d for d in range(1, H + 1) if H % d == 0]
    fitting = [d for d in divs if _vmem_bytes_estimate(d, W, C, Ch) <= budget] or [1]
    sweet = [d for d in fitting if d * W <= target_tokens] or [min(fitting)]
    stepped = [d for d in sweet if B * (H // d) >= min_steps]
    return max(stepped) if stepped else max(sweet)


def cffn_forward(x, w1, b1, wd, bd, w2, b2, H, W, *, row_tile=None,
                 use_bf16_matmul=None):
    """x: (B, N, C) with N == H*W.  Weights are channels-last matrices:
       conv1.weight (Ch,C,1,1) -> w1 (C,Ch);  dwconv.weight (Ch,1,3,3) -> wd (9,Ch);
       conv2.weight (C,Ch,1,1) -> w2 (Ch,C);  biases as (1, ch) rows."""
    B, N, C = x.shape
    Ch = w1.shape[1]
    assert N == H * W
    assert W % 8 == 0, "W must be a multiple of 8 (sublane) for the tiled kernel"

    # bf16 MXU operands only when the surrounding model already runs bf16
    # (keeps the f32 path accurate to the 1e-4 reference tolerance).
    if use_bf16_matmul is None:
        use_bf16_matmul = (x.dtype == jnp.bfloat16)

    TH = row_tile if row_tile is not None else _choose_row_tile(B, H, W, C, Ch)
    assert H % TH == 0, "row_tile must divide H"
    NT = H // TH
    Nc = TH * W

    vmem_need = _vmem_bytes_estimate(TH, W, C, Ch)
    vmem_limit = int(min(max(2 * vmem_need, 32 * 1024 * 1024), _vmem_budget_bytes()))

    kernel = functools.partial(cffn_kernel, W=W, TH=TH, bf16_mxu=use_bf16_matmul)

    # Activations stay unpadded in HBM: block last dim == full C / Ch is legal,
    # Mosaic lane-pads the VMEM tiles internally, so no wrapper pad/slice passes
    # and the kernel's HBM I/O is C-wide instead of 128-wide.
    return pl.pallas_call(
        kernel,
        out_shape=jax.ShapeDtypeStruct((B, N, C), x.dtype),
        grid=(B, NT),
        in_specs=[
            # centre tile: TH whole image rows
            pl.BlockSpec((1, Nc, C), lambda b, i: (b, i, 0)),
            # one-row halo above / below; block unit = one image row (W tokens),
            # clamped at the image border and zeroed inside the kernel.
            pl.BlockSpec((1, W, C),
                         lambda b, i: (b, jnp.maximum(i * TH - 1, 0), 0)),
            pl.BlockSpec((1, W, C),
                         lambda b, i: (b, jnp.minimum(i * TH + TH, H - 1), 0)),
            pl.BlockSpec((C, Ch), lambda b, i: (0, 0)),    # w1
            pl.BlockSpec((1, Ch), lambda b, i: (0, 0)),    # b1
            pl.BlockSpec((9, Ch), lambda b, i: (0, 0)),    # wd (3x3 taps flattened)
            pl.BlockSpec((1, Ch), lambda b, i: (0, 0)),    # bd
            pl.BlockSpec((Ch, C), lambda b, i: (0, 0)),    # w2
            pl.BlockSpec((1, C), lambda b, i: (0, 0)),     # b2
        ],
        out_specs=pl.BlockSpec((1, Nc, C), lambda b, i: (b, i, 0)),
        compiler_params=pltpu.CompilerParams(
            # Both grid axes are independent.  On v7x, confirm in a profile that
            # the grid is sharded across the two TensorCores; if not, switch the
            # leading (B) axis to pltpu.CORE_PARALLEL.
            dimension_semantics=("parallel", "parallel"),
            vmem_limit_bytes=vmem_limit),
    )(x, x, x, w1, b1, wd, bd, w2, b2)


# ---------------- pure-JAX reference (NCHW convs, like PyTorch) --------------
def cffn_ref(x, w1, b1, wd, bd, w2, b2, H, W):
    B, N, C = x.shape
    Ch = w1.shape[1]
    xi = jnp.transpose(x, (0, 2, 1)).reshape(B, C, H, W)               # NCHW
    k1 = jnp.transpose(w1, (1, 0)).reshape(Ch, C, 1, 1)                # OIHW
    h = lax.conv_general_dilated(xi, k1, (1, 1), 'VALID') + b1.reshape(1, Ch, 1, 1)
    kd = jnp.transpose(wd, (1, 0)).reshape(Ch, 1, 3, 3)
    h = lax.conv_general_dilated(h, kd, (1, 1), ((1, 1), (1, 1)),
                                 feature_group_count=Ch) + bd.reshape(1, Ch, 1, 1)
    h = jax.nn.gelu(h, approximate=False)
    k2 = jnp.transpose(w2, (1, 0)).reshape(C, Ch, 1, 1)
    y = lax.conv_general_dilated(h, k2, (1, 1), 'VALID') + b2.reshape(1, C, 1, 1)
    return jnp.transpose(y.reshape(B, C, N), (0, 2, 1))


if __name__ == "__main__":
    key = jax.random.PRNGKey(0)
    B, dim, Hs, Ws = 2, 4, 16, 16
    ffn_expansion_factor = 4
    Ch = dim * ffn_expansion_factor
    N = Hs * Ws

    ks = jax.random.split(key, 7)
    x = jax.random.normal(ks[0], (B, N, dim), jnp.float32)
    # Deterministic synthetic parameters (torch layouts folded into matrices):
    #   conv1.weight (Ch, dim, 1, 1) -> w1 (dim, Ch)
    #   dwconv.weight (Ch, 1, 3, 3)  -> wd (9, Ch), row k = tap (k//3, k%3)
    #   conv2.weight (dim, Ch, 1, 1) -> w2 (Ch, dim)
    w1 = jax.random.normal(ks[1], (dim, Ch), jnp.float32) * 0.2
    b1 = jax.random.normal(ks[2], (1, Ch), jnp.float32) * 0.1
    wd = jax.random.normal(ks[3], (9, Ch), jnp.float32) * 0.2
    bd = jax.random.normal(ks[4], (1, Ch), jnp.float32) * 0.1
    w2 = jax.random.normal(ks[5], (Ch, dim), jnp.float32) * 0.2
    b2 = jax.random.normal(ks[6], (1, dim), jnp.float32) * 0.1

    # Tile chooser picks TH=4 here (8 grid steps), exercising top / interior /
    # bottom halo handling.
    out = cffn_forward(x, w1, b1, wd, bd, w2, b2, Hs, Ws)
    out = jax.block_until_ready(out)

    ref = cffn_ref(x, w1, b1, wd, bd, w2, b2, Hs, Ws)
    assert out.shape == (B, N, dim)
    max_err = float(jnp.max(jnp.abs(out - ref)))
    assert max_err < 1e-4, f"mismatch vs reference: {max_err}"
    print("KERNEL_OK")
</pallas_src>

<mosaic_0001>
module attributes {stable_mosaic.version = 11 : i64} {
  func.func @cffn_kernel(%arg0: i32, %arg1: i32, %arg2: memref<1x64x4xf32, #tpu.memory_space<vmem>>, %arg3: memref<1x16x4xf32, #tpu.memory_space<vmem>>, %arg4: memref<1x16x4xf32, #tpu.memory_space<vmem>>, %arg5: memref<4x16xf32, #tpu.memory_space<vmem>>, %arg6: memref<1x16xf32, #tpu.memory_space<vmem>>, %arg7: memref<9x16xf32, #tpu.memory_space<vmem>>, %arg8: memref<1x16xf32, #tpu.memory_space<vmem>>, %arg9: memref<16x4xf32, #tpu.memory_space<vmem>>, %arg10: memref<1x4xf32, #tpu.memory_space<vmem>>, %arg11: memref<1x64x4xf32, #tpu.memory_space<vmem>>) attributes {dimension_semantics = [#tpu.dimension_semantics<parallel>, #tpu.dimension_semantics<parallel>], iteration_bounds = array<i64: 2, 4>, scalar_prefetch = 0 : i64, scratch_operands = 0 : i64, tpu.core_type = #tpu.core_type<tc>, window_params = [{transform_indices = @transform_0, window_bounds = array<i64: 1, 64, 4>}, {transform_indices = @transform_1, window_bounds = array<i64: 1, 16, 4>}, {transform_indices = @transform_2, window_bounds = array<i64: 1, 16, 4>}, {pipeline_mode = #tpu.pipeline_mode<synchronous>, transform_indices = @transform_3, window_bounds = array<i64: 4, 16>}, {pipeline_mode = #tpu.pipeline_mode<synchronous>, transform_indices = @transform_4, window_bounds = array<i64: 1, 16>}, {pipeline_mode = #tpu.pipeline_mode<synchronous>, transform_indices = @transform_5, window_bounds = array<i64: 9, 16>}, {pipeline_mode = #tpu.pipeline_mode<synchronous>, transform_indices = @transform_6, window_bounds = array<i64: 1, 16>}, {pipeline_mode = #tpu.pipeline_mode<synchronous>, transform_indices = @transform_7, window_bounds = array<i64: 16, 4>}, {pipeline_mode = #tpu.pipeline_mode<synchronous>, transform_indices = @transform_8, window_bounds = array<i64: 1, 4>}, {transform_indices = @transform_9, window_bounds = array<i64: 1, 64, 4>}]} {
    %c0 = arith.constant 0 : index
    %c0_0 = arith.constant 0 : index
    %c0_1 = arith.constant 0 : index
    %0 = vector.load %arg3[%c0, %c0_0, %c0_1] : memref<1x16x4xf32, #tpu.memory_space<vmem>>, vector<1x16x4xf32>
    %1 = vector.shape_cast %0 : vector<1x16x4xf32> to vector<16x4xf32>
    %c0_2 = arith.constant 0 : index
    %c0_3 = arith.constant 0 : index
    %c0_4 = arith.constant 0 : index
    %2 = vector.load %arg2[%c0_2, %c0_3, %c0_4] : memref<1x64x4xf32, #tpu.memory_space<vmem>>, vector<1x64x4xf32>
    %3 = vector.shape_cast %2 : vector<1x64x4xf32> to vector<64x4xf32>
    %c0_5 = arith.constant 0 : index
    %c0_6 = arith.constant 0 : index
    %c0_7 = arith.constant 0 : index
    %4 = vector.load %arg4[%c0_5, %c0_6, %c0_7] : memref<1x16x4xf32, #tpu.memory_space<vmem>>, vector<1x16x4xf32>
    %5 = vector.shape_cast %4 : vector<1x16x4xf32> to vector<16x4xf32>
    %6 = tpu.concatenate %1, %3, %5 in 0 : vector<16x4xf32>, vector<64x4xf32>, vector<16x4xf32> -> vector<96x4xf32>
    %c0_8 = arith.constant 0 : index
    %c0_9 = arith.constant 0 : index
    %7 = vector.load %arg5[%c0_8, %c0_9] : memref<4x16xf32, #tpu.memory_space<vmem>>, vector<4x16xf32>
    %cst = arith.constant dense<0.000000e+00> : vector<96x16xf32>
    %8 = tpu.matmul %6, %7, %cst {dimension_numbers = #tpu.dot_dimension_numbers<[1], [0], [0], [1], [0, 0, 1, 1], [], []>} : vector<96x4xf32>, vector<4x16xf32>, vector<96x16xf32> -> vector<96x16xf32>
    %c0_10 = arith.constant 0 : index
    %c0_11 = arith.constant 0 : index
    %9 = vector.load %arg6[%c0_10, %c0_11] : memref<1x16xf32, #tpu.memory_space<vmem>>, vector<1x16xf32>
    %10 = vector.broadcast %9 : vector<1x16xf32> to vector<96x16xf32>
    %11 = arith.addf %8, %10 : vector<96x16xf32>
    %12 = tpu.iota {dimensions = array<i32: 0>} : vector<96x1xi32>
    %c16_i32 = arith.constant 16 : i32
    %13 = vector.broadcast %c16_i32 : i32 to vector<96x1xi32>
    %14 = arith.cmpi sge, %12, %13 : vector<96x1xi32>
    %c0_i32 = arith.constant 0 : i32
    %15 = arith.cmpi sgt, %arg1, %c0_i32 : i32
    %16 = vector.broadcast %15 : i1 to vector<96x1xi1>
    %17 = arith.ori %14, %16 : vector<96x1xi1>
    %c80_i32 = arith.constant 80 : i32
    %18 = vector.broadcast %c80_i32 : i32 to vector<96x1xi32>
    %19 = arith.cmpi slt, %12, %18 : vector<96x1xi32>
    %c3_i32 = arith.constant 3 : i32
    %20 = arith.cmpi slt, %arg1, %c3_i32 : i32
    %21 = vector.broadcast %20 : i1 to vector<96x1xi1>
    %22 = arith.ori %19, %21 : vector<96x1xi1>
    %23 = arith.andi %17, %22 : vector<96x1xi1>
    %cst_12 = arith.constant 0.000000e+00 : f32
    %24 = vector.shape_cast %23 : vector<96x1xi1> to vector<96x1xi1>
    %25 = vector.broadcast %24 : vector<96x1xi1> to vector<96x16xi1>
    %26 = vector.broadcast %cst_12 : f32 to vector<96x16xf32>
    %27 = arith.select %25, %11, %26 : vector<96x16xi1>, vector<96x16xf32>
    %c16_i32_13 = arith.constant 16 : i32
    %c0_i32_14 = arith.constant 0 : i32
    %28 = arith.cmpi eq, %c16_i32_13, %c0_i32_14 : i32
    %c1_i32 = arith.constant 1 : i32
    %29 = arith.select %28, %c1_i32, %c16_i32_13 : i32
    %30 = vector.broadcast %29 : i32 to vector<96x1xi32>
    %31 = arith.remsi %12, %30 : vector<96x1xi32>
    %c0_i32_15 = arith.constant 0 : i32
    %32 = vector.broadcast %c0_i32_15 : i32 to vector<96x1xi32>
    %33 = arith.cmpi ne, %31, %32 : vector<96x1xi32>
    %c0_i32_16 = arith.constant 0 : i32
    %34 = vector.broadcast %c0_i32_16 : i32 to vector<96x1xi32>
    %35 = arith.cmpi slt, %31, %34 : vector<96x1xi32>
    %c0_i32_17 = arith.constant 0 : i32
    %36 = arith.cmpi slt, %29, %c0_i32_17 : i32
    %37 = vector.broadcast %36 : i1 to vector<96x1xi1>
    %38 = vector.broadcast %37 : vector<96x1xi1> to vector<96x1xi1>
    %39 = arith.xori %35, %38 : vector<96x1xi1>
    %40 = arith.andi %39, %33 : vector<96x1xi1>
    %41 = vector.broadcast %29 : i32 to vector<96x1xi32>
    %42 = arith.addi %31, %41 : vector<96x1xi32>
    %43 = arith.select %40, %42, %31 : vector<96x1xi1>, vector<96x1xi32>
    %c0_18 = arith.constant 0 : index
    %c0_19 = arith.constant 0 : index
    %44 = vector.load %arg7[%c0_18, %c0_19] : memref<9x16xf32, #tpu.memory_space<vmem>>, vector<9x16xf32>
    %c1_i32_20 = arith.constant 1 : i32
    %45 = tpu.dynamic_rotate %27 by %c1_i32_20 dim 0 : vector<96x16xf32>, i32 -> vector<96x16xf32>
    %c1_i32_21 = arith.constant 1 : i32
    %46 = vector.broadcast %c1_i32_21 : i32 to vector<96x1xi32>
    %47 = arith.cmpi sge, %43, %46 : vector<96x1xi32>
    %cst_22 = arith.constant 0.000000e+00 : f32
    %48 = vector.shape_cast %47 : vector<96x1xi1> to vector<96x1xi1>
    %49 = vector.broadcast %48 : vector<96x1xi1> to vector<96x16xi1>
    %50 = vector.broadcast %cst_22 : f32 to vector<96x16xf32>
    %51 = arith.select %49, %45, %50 : vector<96x16xi1>, vector<96x16xf32>
    %52 = vector.extract_strided_slice %51 {offsets = [0, 0], sizes = [64, 16], strides = [1, 1]} : vector<96x16xf32> to vector<64x16xf32>
    %53 = vector.extract_strided_slice %44 {offsets = [0, 0], sizes = [1, 16], strides = [1, 1]} : vector<9x16xf32> to vector<1x16xf32>
    %54 = vector.broadcast %53 : vector<1x16xf32> to vector<64x16xf32>
    %55 = arith.mulf %52, %54 : vector<64x16xf32>
    %c0_23 = arith.constant 0 : index
    %c0_24 = arith.constant 0 : index
    %56 = vector.load %arg8[%c0_23, %c0_24] : memref<1x16xf32, #tpu.memory_space<vmem>>, vector<1x16xf32>
    %57 = vector.broadcast %56 : vector<1x16xf32> to vector<64x16xf32>
    %58 = arith.addf %55, %57 : vector<64x16xf32>
    %59 = vector.extract_strided_slice %51 {offsets = [16, 0], sizes = [64, 16], strides = [1, 1]} : vector<96x16xf32> to vector<64x16xf32>
    %60 = vector.extract_strided_slice %44 {offsets = [3, 0], sizes = [1, 16], strides = [1, 1]} : vector<9x16xf32> to vector<1x16xf32>
    %61 = vector.broadcast %60 : vector<1x16xf32> to vector<64x16xf32>
    %62 = arith.mulf %59, %61 : vector<64x16xf32>
    %63 = arith.addf %58, %62 : vector<64x16xf32>
    %64 = vector.extract_strided_slice %51 {offsets = [32, 0], sizes = [64, 16], strides = [1, 1]} : vector<96x16xf32> to vector<64x16xf32>
    %65 = vector.extract_strided_slice %44 {offsets = [6, 0], sizes = [1, 16], strides = [1, 1]} : vector<9x16xf32> to vector<1x16xf32>
    %66 = vector.broadcast %65 : vector<1x16xf32> to vector<64x16xf32>
    %67 = arith.mulf %64, %66 : vector<64x16xf32>
    %68 = arith.addf %63, %67 : vector<64x16xf32>
    %69 = vector.extract_strided_slice %27 {offsets = [0, 0], sizes = [64, 16], strides = [1, 1]} : vector<96x16xf32> to vector<64x16xf32>
    %70 = vector.extract_strided_slice %44 {offsets = [1, 0], sizes = [1, 16], strides = [1, 1]} : vector<9x16xf32> to vector<1x16xf32>
    %71 = vector.broadcast %70 : vector<1x16xf32> to vector<64x16xf32>
    %72 = arith.mulf %69, %71 : vector<64x16xf32>
    %73 = arith.addf %68, %72 : vector<64x16xf32>
    %74 = vector.extract_strided_slice %27 {offsets = [16, 0], sizes = [64, 16], strides = [1, 1]} : vector<96x16xf32> to vector<64x16xf32>
    %75 = vector.extract_strided_slice %44 {offsets = [4, 0], sizes = [1, 16], strides = [1, 1]} : vector<9x16xf32> to vector<1x16xf32>
    %76 = vector.broadcast %75 : vector<1x16xf32> to vector<64x16xf32>
    %77 = arith.mulf %74, %76 : vector<64x16xf32>
    %78 = arith.addf %73, %77 : vector<64x16xf32>
    %79 = vector.extract_strided_slice %27 {offsets = [32, 0], sizes = [64, 16], strides = [1, 1]} : vector<96x16xf32> to vector<64x16xf32>
    %80 = vector.extract_strided_slice %44 {offsets = [7, 0], sizes = [1, 16], strides = [1, 1]} : vector<9x16xf32> to vector<1x16xf32>
    %81 = vector.broadcast %80 : vector<1x16xf32> to vector<64x16xf32>
    %82 = arith.mulf %79, %81 : vector<64x16xf32>
    %83 = arith.addf %78, %82 : vector<64x16xf32>
    %c95_i32 = arith.constant 95 : i32
    %84 = tpu.dynamic_rotate %27 by %c95_i32 dim 0 : vector<96x16xf32>, i32 -> vector<96x16xf32>
    %c14_i32 = arith.constant 14 : i32
    %85 = vector.broadcast %c14_i32 : i32 to vector<96x1xi32>
    %86 = arith.cmpi sle, %43, %85 : vector<96x1xi32>
    %cst_25 = arith.constant 0.000000e+00 : f32
    %87 = vector.shape_cast %86 : vector<96x1xi1> to vector<96x1xi1>
    %88 = vector.broadcast %87 : vector<96x1xi1> to vector<96x16xi1>
    %89 = vector.broadcast %cst_25 : f32 to vector<96x16xf32>
    %90 = arith.select %88, %84, %89 : vector<96x16xi1>, vector<96x16xf32>
    %91 = vector.extract_strided_slice %90 {offsets = [0, 0], sizes = [64, 16], strides = [1, 1]} : vector<96x16xf32> to vector<64x16xf32>
    %92 = vector.extract_strided_slice %44 {offsets = [2, 0], sizes = [1, 16], strides = [1, 1]} : vector<9x16xf32> to vector<1x16xf32>
    %93 = vector.broadcast %92 : vector<1x16xf32> to vector<64x16xf32>
    %94 = arith.mulf %91, %93 : vector<64x16xf32>
    %95 = arith.addf %83, %94 : vector<64x16xf32>
    %96 = vector.extract_strided_slice %90 {offsets = [16, 0], sizes = [64, 16], strides = [1, 1]} : vector<96x16xf32> to vector<64x16xf32>
    %97 = vector.extract_strided_slice %44 {offsets = [5, 0], sizes = [1, 16], strides = [1, 1]} : vector<9x16xf32> to vector<1x16xf32>
    %98 = vector.broadcast %97 : vector<1x16xf32> to vector<64x16xf32>
    %99 = arith.mulf %96, %98 : vector<64x16xf32>
    %100 = arith.addf %95, %99 : vector<64x16xf32>
    %101 = vector.extract_strided_slice %90 {offsets = [32, 0], sizes = [64, 16], strides = [1, 1]} : vector<96x16xf32> to vector<64x16xf32>
    %102 = vector.extract_strided_slice %44 {offsets = [8, 0], sizes = [1, 16], strides = [1, 1]} : vector<9x16xf32> to vector<1x16xf32>
    %103 = vector.broadcast %102 : vector<1x16xf32> to vector<64x16xf32>
    %104 = arith.mulf %101, %103 : vector<64x16xf32>
    %105 = arith.addf %100, %104 : vector<64x16xf32>
    %cst_26 = arith.constant 0.707106769 : f32
    %106 = vector.broadcast %cst_26 : f32 to vector<64x16xf32>
    %107 = arith.mulf %105, %106 : vector<64x16xf32>
    %108 = math.absf %107 : vector<64x16xf32>
    %cst_27 = arith.constant 1.41421354 : f32
    %109 = vector.broadcast %cst_27 : f32 to vector<64x16xf32>
    %110 = arith.mulf %108, %109 : vector<64x16xf32>
    %cst_28 = arith.constant 0.327591091 : f32
    %111 = vector.broadcast %cst_28 : f32 to vector<64x16xf32>
    %112 = arith.mulf %111, %108 : vector<64x16xf32>
    %cst_29 = arith.constant 1.000000e+00 : f32
    %113 = vector.broadcast %cst_29 : f32 to vector<64x16xf32>
    %114 = arith.addf %113, %112 : vector<64x16xf32>
    %115 = tpu.reciprocal %114 : vector<64x16xf32> -> vector<64x16xf32>
    %cst_30 = arith.constant 1.06140542 : f32
    %116 = vector.broadcast %cst_30 : f32 to vector<64x16xf32>
    %117 = arith.mulf %115, %116 : vector<64x16xf32>
    %cst_31 = arith.constant -1.45315206 : f32
    %118 = vector.broadcast %cst_31 : f32 to vector<64x16xf32>
    %119 = arith.addf %118, %117 : vector<64x16xf32>
    %120 = arith.mulf %115, %119 : vector<64x16xf32>
    %cst_32 = arith.constant 1.42141378 : f32
    %121 = vector.broadcast %cst_32 : f32 to vector<64x16xf32>
    %122 = arith.addf %121, %120 : vector<64x16xf32>
    %123 = arith.mulf %115, %122 : vector<64x16xf32>
    %cst_33 = arith.constant -0.284496725 : f32
    %124 = vector.broadcast %cst_33 : f32 to vector<64x16xf32>
    %125 = arith.addf %124, %123 : vector<64x16xf32>
    %126 = arith.mulf %115, %125 : vector<64x16xf32>
    %cst_34 = arith.constant 0.254829586 : f32
    %127 = vector.broadcast %cst_34 : f32 to vector<64x16xf32>
    %128 = arith.addf %127, %126 : vector<64x16xf32>
    %129 = arith.mulf %115, %128 : vector<64x16xf32>
    %130 = arith.addf %105, %110 : vector<64x16xf32>
    %cst_35 = arith.constant 5.000000e-01 : f32
    %131 = vector.broadcast %cst_35 : f32 to vector<64x16xf32>
    %132 = arith.mulf %131, %130 : vector<64x16xf32>
    %cst_36 = arith.constant 5.000000e-01 : f32
    %133 = vector.broadcast %cst_36 : f32 to vector<64x16xf32>
    %134 = arith.mulf %133, %110 : vector<64x16xf32>
    %135 = arith.mulf %108, %108 : vector<64x16xf32>
    %cst_37 = arith.constant 0.000000e+00 : f32
    %136 = vector.broadcast %cst_37 : f32 to vector<64x16xf32>
    %137 = arith.subf %136, %135 : vector<64x16xf32>
    %138 = math.exp %137 : vector<64x16xf32>
    %139 = arith.mulf %129, %138 : vector<64x16xf32>
    %140 = arith.mulf %134, %139 : vector<64x16xf32>
    %141 = arith.subf %132, %140 : vector<64x16xf32>
    %c0_38 = arith.constant 0 : index
    %c0_39 = arith.constant 0 : index
    %142 = vector.load %arg9[%c0_38, %c0_39] : memref<16x4xf32, #tpu.memory_space<vmem>>, vector<16x4xf32>
    %cst_40 = arith.constant dense<0.000000e+00> : vector<64x4xf32>
    %143 = tpu.matmul %141, %142, %cst_40 {dimension_numbers = #tpu.dot_dimension_numbers<[1], [0], [0], [1], [0, 0, 1, 1], [], []>} : vector<64x16xf32>, vector<16x4xf32>, vector<64x4xf32> -> vector<64x4xf32>
    %c0_41 = arith.constant 0 : index
    %c0_42 = arith.constant 0 : index
    %144 = vector.load %arg10[%c0_41, %c0_42] : memref<1x4xf32, #tpu.memory_space<vmem>>, vector<1x4xf32>
    %145 = vector.broadcast %144 : vector<1x4xf32> to vector<64x4xf32>
    %146 = arith.addf %143, %145 : vector<64x4xf32>
    %c0_43 = arith.constant 0 : index
    %c0_44 = arith.constant 0 : index
    %c0_45 = arith.constant 0 : index
    %147 = vector.load %arg11[%c0_43, %c0_44, %c0_45] : memref<1x64x4xf32, #tpu.memory_space<vmem>>, vector<1x64x4xf32>
    %148 = vector.shape_cast %147 : vector<1x64x4xf32> to vector<64x4xf32>
    %149 = vector.shape_cast %146 : vector<64x4xf32> to vector<1x64x4xf32>
    tpu.vector_store %arg11[%c0_43, %c0_44, %c0_45], %149 {strides = array<i32>} : memref<1x64x4xf32, #tpu.memory_space<vmem>>, vector<1x64x4xf32>,
    return
  }
  func.func @transform_0(%arg0: i32, %arg1: i32) -> (i32, i32, i32) {
    %c0_i32 = arith.constant 0 : i32
    %c0_i32_0 = arith.constant 0 : i32
    return %arg0, %arg1, %c0_i32 : i32, i32, i32
  }
  func.func @transform_1(%arg0: i32, %arg1: i32) -> (i32, i32, i32) {
    %c4_i32 = arith.constant 4 : i32
    %0 = arith.muli %arg1, %c4_i32 : i32
    %c1_i32 = arith.constant 1 : i32
    %1 = arith.subi %0, %c1_i32 : i32
    %c0_i32 = arith.constant 0 : i32
    %2 = arith.maxsi %1, %c0_i32 : i32
    %c0_i32_0 = arith.constant 0 : i32
    %c0_i32_1 = arith.constant 0 : i32
    return %arg0, %2, %c0_i32_0 : i32, i32, i32
  }
  func.func @transform_2(%arg0: i32, %arg1: i32) -> (i32, i32, i32) {
    %c4_i32 = arith.constant 4 : i32
    %0 = arith.muli %arg1, %c4_i32 : i32
    %c4_i32_0 = arith.constant 4 : i32
    %1 = arith.addi %0, %c4_i32_0 : i32
    %c15_i32 = arith.constant 15 : i32
    %2 = arith.minsi %1, %c15_i32 : i32
    %c0_i32 = arith.constant 0 : i32
    %c0_i32_1 = arith.constant 0 : i32
    return %arg0, %2, %c0_i32 : i32, i32, i32
  }
  func.func @transform_3(%arg0: i32, %arg1: i32) -> (i32, i32) {
    %c0_i32 = arith.constant 0 : i32
    %c0_i32_0 = arith.constant 0 : i32
    %c0_i32_1 = arith.constant 0 : i32
    return %c0_i32, %c0_i32_0 : i32, i32
  }
  func.func @transform_4(%arg0: i32, %arg1: i32) -> (i32, i32) {
    %c0_i32 = arith.constant 0 : i32
    %c0_i32_0 = arith.constant 0 : i32
    %c0_i32_1 = arith.constant 0 : i32
    return %c0_i32, %c0_i32_0 : i32, i32
  }
  func.func @transform_5(%arg0: i32, %arg1: i32) -> (i32, i32) {
    %c0_i32 = arith.constant 0 : i32
    %c0_i32_0 = arith.constant 0 : i32
    %c0_i32_1 = arith.constant 0 : i32
    return %c0_i32, %c0_i32_0 : i32, i32
  }
  func.func @transform_6(%arg0: i32, %arg1: i32) -> (i32, i32) {
    %c0_i32 = arith.constant 0 : i32
    %c0_i32_0 = arith.constant 0 : i32
    %c0_i32_1 = arith.constant 0 : i32
    return %c0_i32, %c0_i32_0 : i32, i32
  }
  func.func @transform_7(%arg0: i32, %arg1: i32) -> (i32, i32) {
    %c0_i32 = arith.constant 0 : i32
    %c0_i32_0 = arith.constant 0 : i32
    %c0_i32_1 = arith.constant 0 : i32
    return %c0_i32, %c0_i32_0 : i32, i32
  }
  func.func @transform_8(%arg0: i32, %arg1: i32) -> (i32, i32) {
    %c0_i32 = arith.constant 0 : i32
    %c0_i32_0 = arith.constant 0 : i32
    %c0_i32_1 = arith.constant 0 : i32
    return %c0_i32, %c0_i32_0 : i32, i32
  }
  func.func @transform_9(%arg0: i32, %arg1: i32) -> (i32, i32, i32) {
    %c0_i32 = arith.constant 0 : i32
    %c0_i32_0 = arith.constant 0 : i32
    return %arg0, %arg1, %c0_i32 : i32, i32, i32
  }
}

</mosaic_0001>

<llo_original>
// kernel: tpu_custom_call.1
$region0: #{tpu_custom_call.1}
  #allocation0 [shape = 'u32[]', space=smem, size = 0x4, offset = 0x4, fixed_abs, tag = 'smem constant byte address 0x4 - core index']
  #allocation1 [shape = 'u32[144,128]{1,0:T(1,128)}', space=vmem, size = 0x12000, scoped, tag = 'internal scratch']
  %s0 = inlined_call_operand.vmem [shape: f32[2,256,4], index: 0, kind: input, shape index: {}]
  %s1 = inlined_call_operand.vmem [shape: f32[2,256,4], index: 1, kind: input, shape index: {}]
  %s2 = inlined_call_operand.vmem [shape: f32[2,256,4], index: 2, kind: input, shape index: {}]
  %s3 = inlined_call_operand.vmem [shape: f32[4,16], index: 3, kind: input, shape index: {}]
  %s4 = inlined_call_operand.vmem [shape: f32[1,16], index: 4, kind: input, shape index: {}]
  %s5 = inlined_call_operand.vmem [shape: f32[9,16], index: 5, kind: input, shape index: {}]
  %s6 = inlined_call_operand.vmem [shape: f32[1,16], index: 6, kind: input, shape index: {}]
  %s7 = inlined_call_operand.vmem [shape: f32[16,4], index: 7, kind: input, shape index: {}]
  %s8 = inlined_call_operand.vmem [shape: f32[1,4], index: 8, kind: input, shape index: {}]
  %s9 = inlined_call_operand.vmem [shape: f32[2,256,4], index: 9, kind: output, shape index: {}]
  %s10 = sld [smem:[#allocation0]]
  $region69: #{tpu_custom_call.1} parent=0
    _
  %s12 = ssub.s32 1, %s10
  %s13 = scalar_select 0, %s12, %s10
  loop: start=0, step=1, limit=10
  $region2: #{tpu_custom_call.1} parent=0 // loop_pre_header
    _
  $region3: #{tpu_custom_call.1} parent=0 // loop_header
    %s15 = sphi 0, %s19
    %p16 = scmp.ge.s32.totalorder %s15, 10
    %s22 = sphi 0, %s34
    %s23 = sphi 0, %s30
    %s24 = sphi 0, %s22
    %s25 = sphi 0, %s23
    %s26 = sphi 0, %s24
    %s27 = sphi 0, %s25
    %s39 = sphi 0, %s41
    %s42 = sphi 0, %s39
    %s43 = sphi 0, %s42
    %s59 = sphi 0, %s43
    %s75 = sphi 0, %s77
    %s78 = sphi 0, %s75
    %s79 = sphi 0, %s78
    %s95 = sphi 0, %s79
    %s111 = sphi 0, %s113
    %s114 = sphi 0, %s111
    %s115 = sphi 0, %s114
    %s131 = sphi 0, %s115
    %s135 = sphi 0, %s135
    %s137 = sphi 0, %s135
    %s138 = sphi 0, %s137
    %s152 = sphi 0, %s138
    %s156 = sphi 0, %s156
    %s158 = sphi 0, %s156
    %s159 = sphi 0, %s158
    %s173 = sphi 0, %s159
    %s177 = sphi 0, %s177
    %s179 = sphi 0, %s177
    %s180 = sphi 0, %s179
    %s194 = sphi 0, %s180
    %s198 = sphi 0, %s198
    %s200 = sphi 0, %s198
    %s201 = sphi 0, %s200
    %s215 = sphi 0, %s201
    %s219 = sphi 0, %s219
    %s221 = sphi 0, %s219
    %s222 = sphi 0, %s221
    %s236 = sphi 0, %s222
    %s240 = sphi 0, %s240
    %s242 = sphi 0, %s240
    %s243 = sphi 0, %s242
    %s257 = sphi 0, %s243
    %s265 = sphi 0, %s267
    %s268 = sphi 0, %s265
    %s269 = sphi 0, %s268
    %s285 = sphi 0, %s269
  $region4: #{tpu_custom_call.1} parent=0 // loop_header_branch
    %18 = sbr.rel (%p16) target = $region8
  $region5: #{tpu_custom_call.1} parent=0 // loop_body
    %s20 = ssub.s32 %s15, 1
    %s21 = ssub.s32 %s15, 2
    %s28 = sadd.s32 1, %s23
    %p29 = scmp.ge.s32.totalorder %s28, 4
    %s30 = scalar_select %p29, 0, %s28
    %s31 = sadd.s32 1, %s22
    %s32 = scalar_select %p29, %s31, %s22
    %p33 = scmp.ge.s32.totalorder %s32, 2
    %s34 = scalar_select %p33, 0, %s32
    %s35 = ssub.s32 %s22, %s34
    %s36 = ssub.s32 %s23, %s30
    %s37 = sor.u32 %s35, %s36
    %p38 = scmp.eq.s32.totalorder %s37, 0
    %s40 = sadd.s32 %s39, 1
    %s41 = scalar_select %p38, %s39, %s40
    %p44 = pneg %p38
    %p45 = scmp.eq.s32.totalorder %s15, 7
    %p46 = por %p44, %p45
    %p47 = scmp.ne.s32.totalorder %s39, %s42
    %p48 = scmp.eq.s32.totalorder %s15, 0
    %p49 = por %p47, %p48
    %p50 = scmp.ne.s32.totalorder %s39, %s42
    %p51 = scmp.eq.s32.totalorder %s20, 7
    %p52 = por %p50, %p51
    %p53 = scmp.ne.s32.totalorder %s42, %s43
    %p54 = scmp.eq.s32.totalorder %s20, 0
    %p55 = por %p53, %p54
    %p56 = scmp.ne.s32.totalorder %s42, %s43
    %p57 = scmp.eq.s32.totalorder %s21, 7
    %p58 = por %p56, %p57
    %p60 = scmp.ne.s32.totalorder %s43, %s59
    %p61 = scmp.eq.s32.totalorder %s21, 0
    %p62 = por %p60, %p61
    %s63 = smul.u32 %s23, 4
    %s64 = ssub.s32 %s63, 1
    %p65 = scmp.gt.s32.totalorder %s64, 0
    %s66 = scalar_select %p65, %s64, 0
    %s67 = smul.u32 %s30, 4
    %s68 = ssub.s32 %s67, 1
    %p69 = scmp.gt.s32.totalorder %s68, 0
    %s70 = scalar_select %p69, %s68, 0
    %s71 = ssub.s32 %s22, %s34
    %s72 = ssub.s32 %s66, %s70
    %s73 = sor.u32 %s71, %s72
    %p74 = scmp.eq.s32.totalorder %s73, 0
    %s76 = sadd.s32 %s75, 1
    %s77 = scalar_select %p74, %s75, %s76
    %p80 = pneg %p74
    %p81 = scmp.eq.s32.totalorder %s15, 7
    %p82 = por %p80, %p81
    %p83 = scmp.ne.s32.totalorder %s75, %s78
    %p84 = scmp.eq.s32.totalorder %s15, 0
    %p85 = por %p83, %p84
    %p86 = scmp.ne.s32.totalorder %s75, %s78
    %p87 = scmp.eq.s32.totalorder %s20, 7
    %p88 = por %p86, %p87
    %p89 = scmp.ne.s32.totalorder %s78, %s79
    %p90 = scmp.eq.s32.totalorder %s20, 0
    %p91 = por %p89, %p90
    %p92 = scmp.ne.s32.totalorder %s78, %s79
    %p93 = scmp.eq.s32.totalorder %s21, 7
    %p94 = por %p92, %p93
    %p96 = scmp.ne.s32.totalorder %s79, %s95
    %p97 = scmp.eq.s32.totalorder %s21, 0
    %p98 = por %p96, %p97
    %s99 = smul.u32 %s23, 4
    %s100 = sadd.s32 %s99, 4
    %p101 = scmp.lt.s32.totalorder %s100, 15
    %s102 = scalar_select %p101, %s100, 15
    %s103 = smul.u32 %s30, 4
    %s104 = sadd.s32 %s103, 4
    %p105 = scmp.lt.s32.totalorder %s104, 15
    %s106 = scalar_select %p105, %s104, 15
    %s107 = ssub.s32 %s22, %s34
    %s108 = ssub.s32 %s102, %s106
    %s109 = sor.u32 %s107, %s108
    %p110 = scmp.eq.s32.totalorder %s109, 0
    %s112 = sadd.s32 %s111, 1
    %s113 = scalar_select %p110, %s111, %s112
    %p116 = pneg %p110
    %p117 = scmp.eq.s32.totalorder %s15, 7
    %p118 = por %p116, %p117
    %p119 = scmp.ne.s32.totalorder %s111, %s114
    %p120 = scmp.eq.s32.totalorder %s15, 0
    %p121 = por %p119, %p120
    %p122 = scmp.ne.s32.totalorder %s111, %s114
    %p123 = scmp.eq.s32.totalorder %s20, 7
    %p124 = por %p122, %p123
    %p125 = scmp.ne.s32.totalorder %s114, %s115
    %p126 = scmp.eq.s32.totalorder %s20, 0
    %p127 = por %p125, %p126
    %p128 = scmp.ne.s32.totalorder %s114, %s115
    %p129 = scmp.eq.s32.totalorder %s21, 7
    %p130 = por %p128, %p129
    %p132 = scmp.ne.s32.totalorder %s115, %s131
    %p133 = scmp.eq.s32.totalorder %s21, 0
    %p134 = por %p132, %p133
    %s136 = sadd.s32 %s135, 1
    %p139 = scmp.eq.s32.totalorder %s15, 7
    %p140 = scmp.ne.s32.totalorder %s135, %s137
    %p141 = scmp.eq.s32.totalorder %s15, 0
    %p142 = por %p140, %p141
    %p143 = scmp.ne.s32.totalorder %s135, %s137
    %p144 = scmp.eq.s32.totalorder %s20, 7
    %p145 = por %p143, %p144
    %p146 = scmp.ne.s32.totalorder %s137, %s138
    %p147 = scmp.eq.s32.totalorder %s20, 0
    %p148 = por %p146, %p147
    %p149 = scmp.ne.s32.totalorder %s137, %s138
    %p150 = scmp.eq.s32.totalorder %s21, 7
    %p151 = por %p149, %p150
    %p153 = scmp.ne.s32.totalorder %s138, %s152
    %p154 = scmp.eq.s32.totalorder %s21, 0
    %p155 = por %p153, %p154
    %s157 = sadd.s32 %s156, 1
    %p160 = scmp.eq.s32.totalorder %s15, 7
    %p161 = scmp.ne.s32.totalorder %s156, %s158
    %p162 = scmp.eq.s32.totalorder %s15, 0
    %p163 = por %p161, %p162
    %p164 = scmp.ne.s32.totalorder %s156, %s158
    %p165 = scmp.eq.s32.totalorder %s20, 7
    %p166 = por %p164, %p165
    %p167 = scmp.ne.s32.totalorder %s158, %s159
    %p168 = scmp.eq.s32.totalorder %s20, 0
    %p169 = por %p167, %p168
    %p170 = scmp.ne.s32.totalorder %s158, %s159
    %p171 = scmp.eq.s32.totalorder %s21, 7
    %p172 = por %p170, %p171
    %p174 = scmp.ne.s32.totalorder %s159, %s173
    %p175 = scmp.eq.s32.totalorder %s21, 0
    %p176 = por %p174, %p175
    %s178 = sadd.s32 %s177, 1
    %p181 = scmp.eq.s32.totalorder %s15, 7
    %p182 = scmp.ne.s32.totalorder %s177, %s179
    %p183 = scmp.eq.s32.totalorder %s15, 0
    %p184 = por %p182, %p183
    %p185 = scmp.ne.s32.totalorder %s177, %s179
    %p186 = scmp.eq.s32.totalorder %s20, 7
    %p187 = por %p185, %p186
    %p188 = scmp.ne.s32.totalorder %s179, %s180
    %p189 = scmp.eq.s32.totalorder %s20, 0
    %p190 = por %p188, %p189
    %p191 = scmp.ne.s32.totalorder %s179, %s180
    %p192 = scmp.eq.s32.totalorder %s21, 7
    %p193 = por %p191, %p192
    %p195 = scmp.ne.s32.totalorder %s180, %s194
    %p196 = scmp.eq.s32.totalorder %s21, 0
    %p197 = por %p195, %p196
    %s199 = sadd.s32 %s198, 1
    %p202 = scmp.eq.s32.totalorder %s15, 7
    %p203 = scmp.ne.s32.totalorder %s198, %s200
    %p204 = scmp.eq.s32.totalorder %s15, 0
    %p205 = por %p203, %p204
    %p206 = scmp.ne.s32.totalorder %s198, %s200
    %p207 = scmp.eq.s32.totalorder %s20, 7
    %p208 = por %p206, %p207
    %p209 = scmp.ne.s32.totalorder %s200, %s201
    %p210 = scmp.eq.s32.totalorder %s20, 0
    %p211 = por %p209, %p210
    %p212 = scmp.ne.s32.totalorder %s200, %s201
    %p213 = scmp.eq.s32.totalorder %s21, 7
    %p214 = por %p212, %p213
    %p216 = scmp.ne.s32.totalorder %s201, %s215
    %p217 = scmp.eq.s32.totalorder %s21, 0
    %p218 = por %p216, %p217
    %s220 = sadd.s32 %s219, 1
    %p223 = scmp.eq.s32.totalorder %s15, 7
    %p224 = scmp.ne.s32.totalorder %s219, %s221
    %p225 = scmp.eq.s32.totalorder %s15, 0
    %p226 = por %p224, %p225
    %p227 = scmp.ne.s32.totalorder %s219, %s221
    %p228 = scmp.eq.s32.totalorder %s20, 7
    %p229 = por %p227, %p228
    %p230 = scmp.ne.s32.totalorder %s221, %s222
    %p231 = scmp.eq.s32.totalorder %s20, 0
    %p232 = por %p230, %p231
    %p233 = scmp.ne.s32.totalorder %s221, %s222
    %p234 = scmp.eq.s32.totalorder %s21, 7
    %p235 = por %p233, %p234
    %p237 = scmp.ne.s32.totalorder %s222, %s236
    %p238 = scmp.eq.s32.totalorder %s21, 0
    %p239 = por %p237, %p238
    %s241 = sadd.s32 %s240, 1
    %p244 = scmp.eq.s32.totalorder %s15, 7
    %p245 = scmp.ne.s32.totalorder %s240, %s242
    %p246 = scmp.eq.s32.totalorder %s15, 0
    %p247 = por %p245, %p246
    %p248 = scmp.ne.s32.totalorder %s240, %s242
    %p249 = scmp.eq.s32.totalorder %s20, 7
    %p250 = por %p248, %p249
    %p251 = scmp.ne.s32.totalorder %s242, %s243
    %p252 = scmp.eq.s32.totalorder %s20, 0
    %p253 = por %p251, %p252
    %p254 = scmp.ne.s32.totalorder %s242, %s243
    %p255 = scmp.eq.s32.totalorder %s21, 7
    %p256 = por %p254, %p255
    %p258 = scmp.ne.s32.totalorder %s243, %s257
    %p259 = scmp.eq.s32.totalorder %s21, 0
    %p260 = por %p258, %p259
    %s261 = ssub.s32 %s22, %s34
    %s262 = ssub.s32 %s23, %s30
    %s263 = sor.u32 %s261, %s262
    %p264 = scmp.eq.s32.totalorder %s263, 0
    %s266 = sadd.s32 %s265, 1
    %s267 = scalar_select %p264, %s265, %s266
    %p270 = pneg %p264
    %p271 = scmp.eq.s32.totalorder %s15, 7
    %p272 = por %p270, %p271
    %p273 = scmp.ne.s32.totalorder %s265, %s268
    %p274 = scmp.eq.s32.totalorder %s15, 0
    %p275 = por %p273, %p274
    %p276 = scmp.ne.s32.totalorder %s265, %s268
    %p277 = scmp.eq.s32.totalorder %s20, 7
    %p278 = por %p276, %p277
    %p279 = scmp.ne.s32.totalorder %s268, %s269
    %p280 = scmp.eq.s32.totalorder %s20, 0
    %p281 = por %p279, %p280
    %p282 = scmp.ne.s32.totalorder %s268, %s269
    %p283 = scmp.eq.s32.totalorder %s21, 7
    %p284 = por %p282, %p283
    %p286 = scmp.ne.s32.totalorder %s269, %s285
    %p287 = scmp.eq.s32.totalorder %s21, 0
    %p288 = por %p286, %p287
    %p289 = scmp.le.s32.totalorder 1, %s15
    %p290 = scmp.lt.s32.totalorder %s15, 9
    %p291 = pnand %p289, %p290
    %p292 = pneg %p291
    // Predicated region
    $region9: #{tpu_custom_call.1} parent=5 // pred_check
      _
    $region10: #{tpu_custom_call.1} parent=5 // pred_check_branch
      %294 = sbr.rel (%p291) target = $region12
    $region11: #{tpu_custom_call.1} parent=5 // pred_region
      %s295 = ssub.s32 %s15, 1
      // Predicated region
      $region13: #{tpu_custom_call.1} parent=11 // pred_check
        %p296 = pneg %p148
      $region14: #{tpu_custom_call.1} parent=11 // pred_check_branch
        %298 = sbr.rel (%p296) target = $region16
      $region15: #{tpu_custom_call.1} parent=11 // pred_region
        _
      $region16: #{tpu_custom_call.1} parent=11 // pred_fallthru
        _
      // Predicated region
      $region17: #{tpu_custom_call.1} parent=11 // pred_check
        %p299 = pneg %p169
      $region18: #{tpu_custom_call.1} parent=11 // pred_check_branch
        %301 = sbr.rel (%p299) target = $region20
      $region19: #{tpu_custom_call.1} parent=11 // pred_region
        _
      $region20: #{tpu_custom_call.1} parent=11 // pred_fallthru
        _
      // Predicated region
      $region21: #{tpu_custom_call.1} parent=11 // pred_check
        %p302 = pneg %p190
      $region22: #{tpu_custom_call.1} parent=11 // pred_check_branch
        %304 = sbr.rel (%p302) target = $region24
      $region23: #{tpu_custom_call.1} parent=11 // pred_region
        _
      $region24: #{tpu_custom_call.1} parent=11 // pred_fallthru
        _
      // Predicated region
      $region25: #{tpu_custom_call.1} parent=11 // pred_check
        %p305 = pneg %p211
      $region26: #{tpu_custom_call.1} parent=11 // pred_check_branch
        %307 = sbr.rel (%p305) target = $region28
      $region27: #{tpu_custom_call.1} parent=11 // pred_region
        _
      $region28: #{tpu_custom_call.1} parent=11 // pred_fallthru
        _
      // Predicated region
      $region29: #{tpu_custom_call.1} parent=11 // pred_check
        %p308 = pneg %p232
      $region30: #{tpu_custom_call.1} parent=11 // pred_check_branch
        %310 = sbr.rel (%p308) target = $region32
      $region31: #{tpu_custom_call.1} parent=11 // pred_region
        _
      $region32: #{tpu_custom_call.1} parent=11 // pred_fallthru
        _
      // Predicated region
      $region33: #{tpu_custom_call.1} parent=11 // pred_check
        %p311 = pneg %p253
      $region34: #{tpu_custom_call.1} parent=11 // pred_check_branch
        %313 = sbr.rel (%p311) target = $region36
      $region35: #{tpu_custom_call.1} parent=11 // pred_region
        _
      $region36: #{tpu_custom_call.1} parent=11 // pred_fallthru
        _
    $region12: #{tpu_custom_call.1} parent=5 // pred_fallthru
      _
    %p314 = scmp.lt.s32.totalorder %s15, 8
    // Predicated region
    $region37: #{tpu_custom_call.1} parent=5 // pred_check
      %p315 = pneg %p314
    $region38: #{tpu_custom_call.1} parent=5 // pred_check_branch
      %317 = sbr.rel (%p315) target = $region40
    $region39: #{tpu_custom_call.1} parent=5 // pred_region
      // Predicated region
      $region41: #{tpu_custom_call.1} parent=39 // pred_check
        %p318 = pneg %p49
      $region42: #{tpu_custom_call.1} parent=39 // pred_check_branch
        %320 = sbr.rel (%p318) target = $region44
      $region43: #{tpu_custom_call.1} parent=39 // pred_region
        %s321 = smul.u32 8, %s23
        %p322 = scmp.lt.s32.totalorder %s22, 1
        %s323 = scalar_select %p322, %s22, 1
        %p324 = scmp.lt.s32.totalorder %s321, 31
        %s325 = scalar_select %p324, %s321, 31
        %s326 = smul.addr %s323, 32
        %s327 = sadd.s32 %s325, %s326
        %s328 = smul.addr %s327, 8
        %s329 = scalar_lea.vmem %s0, %s328
        %s330 = smul.u32 8, %s23
      $region44: #{tpu_custom_call.1} parent=39 // pred_fallthru
        _
      // Predicated region
      $region45: #{tpu_custom_call.1} parent=39 // pred_check
        %p331 = pneg %p85
      $region46: #{tpu_custom_call.1} parent=39 // pred_check_branch
        %333 = sbr.rel (%p331) target = $region48
      $region47: #{tpu_custom_call.1} parent=39 // pred_region
        %s334 = smul.u32 %s23, 4
        %s335 = ssub.s32 %s334, 1
        %p336 = scmp.gt.s32.totalorder %s335, 0
        %s337 = scalar_select %p336, %s335, 0
        %s338 = smul.u32 2, %s337
        %p339 = scmp.lt.s32.totalorder %s22, 1
        %s340 = scalar_select %p339, %s22, 1
        %p341 = scmp.lt.s32.totalorder %s338, 31
        %s342 = scalar_select %p341, %s338, 31
        %s343 = smul.addr %s340, 32
        %s344 = sadd.s32 %s342, %s343
        %s345 = smul.addr %s344, 8
        %s346 = scalar_lea.vmem %s1, %s345
        %s347 = smul.u32 %s23, 4
        %s348 = ssub.s32 %s347, 1
        %p349 = scmp.gt.s32.totalorder %s348, 0
        %s350 = scalar_select %p349, %s348, 0
        %s351 = smul.u32 2, %s350
      $region48: #{tpu_custom_call.1} parent=39 // pred_fallthru
        _
      // Predicated region
      $region49: #{tpu_custom_call.1} parent=39 // pred_check
        %p352 = pneg %p121
      $region50: #{tpu_custom_call.1} parent=39 // pred_check_branch
        %354 = sbr.rel (%p352) target = $region52
      $region51: #{tpu_custom_call.1} parent=39 // pred_region
        %s355 = smul.u32 %s23, 4
        %s356 = sadd.s32 %s355, 4
        %p357 = scmp.lt.s32.totalorder %s356, 15
        %s358 = scalar_select %p357, %s356, 15
        %s359 = smul.u32 2, %s358
        %p360 = scmp.lt.s32.totalorder %s22, 1
        %s361 = scalar_select %p360, %s22, 1
        %p362 = scmp.lt.s32.totalorder %s359, 31
        %s363 = scalar_select %p362, %s359, 31
        %s364 = smul.addr %s361, 32
        %s365 = sadd.s32 %s363, %s364
        %s366 = smul.addr %s365, 8
        %s367 = scalar_lea.vmem %s2, %s366
        %s368 = smul.u32 %s23, 4
        %s369 = sadd.s32 %s368, 4
        %p370 = scmp.lt.s32.totalorder %s369, 15
        %s371 = scalar_select %p370, %s369, 15
        %s372 = smul.u32 2, %s371
      $region52: #{tpu_custom_call.1} parent=39 // pred_fallthru
        _
    $region40: #{tpu_custom_call.1} parent=5 // pred_fallthru
      _
    %p373 = scmp.le.s32.totalorder 1, %s15
    %p374 = scmp.lt.s32.totalorder %s15, 9
    %p375 = pnand %p373, %p374
    %p376 = pneg %p375
    // Predicated region
    $region53: #{tpu_custom_call.1} parent=5 // pred_check
      _
    $region54: #{tpu_custom_call.1} parent=5 // pred_check_branch
      %378 = sbr.rel (%p375) target = $region56
    $region55: #{tpu_custom_call.1} parent=5 // pred_region
      %s379 = ssub.s32 %s15, 1
      %s380 = smul.u32 8, %s25
      %p381 = scmp.lt.s32.totalorder %s24, 1
      %s382 = scalar_select %p381, %s24, 1
      %p383 = scmp.lt.s32.totalorder %s380, 31
      %s384 = scalar_select %p383, %s380, 31
      %s385 = smul.addr %s382, 32
      %s386 = sadd.s32 %s384, %s385
      %s387 = smul.addr %s386, 8
      %s388 = scalar_lea.vmem %s0, %s387
      %p389 = pneg %p55
      %p390 = pneg %p52
      %s391 = smul.u32 %s25, 4
      %s392 = ssub.s32 %s391, 1
      %p393 = scmp.gt.s32.totalorder %s392, 0
      %s394 = scalar_select %p393, %s392, 0
      %s395 = smul.u32 2, %s394
      %p396 = scmp.lt.s32.totalorder %s24, 1
      %s397 = scalar_select %p396, %s24, 1
      %p398 = scmp.lt.s32.totalorder %s395, 31
      %s399 = scalar_select %p398, %s395, 31
      %s400 = smul.addr %s397, 32
      %s401 = sadd.s32 %s399, %s400
      %s402 = smul.addr %s401, 8
      %s403 = scalar_lea.vmem %s1, %s402
      %p404 = pneg %p91
      %p405 = pneg %p88
      %s406 = smul.u32 %s25, 4
      %s407 = sadd.s32 %s406, 4
      %p408 = scmp.lt.s32.totalorder %s407, 15
      %s409 = scalar_select %p408, %s407, 15
      %s410 = smul.u32 2, %s409
      %p411 = scmp.lt.s32.totalorder %s24, 1
      %s412 = scalar_select %p411, %s24, 1
      %p413 = scmp.lt.s32.totalorder %s410, 31
      %s414 = scalar_select %p413, %s410, 31
      %s415 = smul.addr %s412, 32
      %s416 = sadd.s32 %s414, %s415
      %s417 = smul.addr %s416, 8
      %s418 = scalar_lea.vmem %s2, %s417
      %p419 = pneg %p127
      %p420 = pneg %p124
      %p421 = pneg %p148
      %p422 = pneg %p145
      %p423 = pneg %p169
      %p424 = pneg %p166
      %p425 = pneg %p190
      %p426 = pneg %p187
      %p427 = pneg %p211
      %p428 = pneg %p208
      %p429 = pneg %p232
      %p430 = pneg %p229
      %p431 = pneg %p253
      %p432 = pneg %p250
      %p433 = pneg %p281
      %p434 = pneg %p278
      %s435 = smul.u32 8, %s25
      %p436 = scmp.lt.s32.totalorder %s24, 1
      %s437 = scalar_select %p436, %s24, 1
      %p438 = scmp.lt.s32.totalorder %s435, 31
      %s439 = scalar_select %p438, %s435, 31
      %s440 = smul.addr %s437, 32
      %s441 = sadd.s32 %s439, %s440
      %s442 = smul.addr %s441, 8
      %s443 = scalar_lea.vmem %s9, %s442
      %s444 = smul.u32 8, %s25
      %p445 = scmp.lt.s32.totalorder %s24, 1
      %s446 = scalar_select %p445, %s24, 1
      %p447 = scmp.lt.s32.totalorder %s444, 31
      %s448 = scalar_select %p447, %s444, 31
      %s449 = smul.addr %s446, 32
      %s450 = sadd.s32 %s448, %s449
      %s451 = smul.addr %s450, 8
      %s452 = scalar_lea.vmem %s0, %s451
      %s453 = smul.u32 8, %s25
      %s454 = smul.u32 %s25, 4
      %s455 = ssub.s32 %s454, 1
      %p456 = scmp.gt.s32.totalorder %s455, 0
      %s457 = scalar_select %p456, %s455, 0
      %s458 = smul.u32 2, %s457
      %p459 = scmp.lt.s32.totalorder %s24, 1
      %s460 = scalar_select %p459, %s24, 1
      %p461 = scmp.lt.s32.totalorder %s458, 31
      %s462 = scalar_select %p461, %s458, 31
      %s463 = smul.addr %s460, 32
      %s464 = sadd.s32 %s462, %s463
      %s465 = smul.addr %s464, 8
      %s466 = scalar_lea.vmem %s1, %s465
      %s467 = smul.u32 %s25, 4
      %s468 = ssub.s32 %s467, 1
      %p469 = scmp.gt.s32.totalorder %s468, 0
      %s470 = scalar_select %p469, %s468, 0
      %s471 = smul.u32 2, %s470
      %s472 = smul.u32 %s25, 4
      %s473 = sadd.s32 %s472, 4
      %p474 = scmp.lt.s32.totalorder %s473, 15
      %s475 = scalar_select %p474, %s473, 15
      %s476 = smul.u32 2, %s475
      %p477 = scmp.lt.s32.totalorder %s24, 1
      %s478 = scalar_select %p477, %s24, 1
      %p479 = scmp.lt.s32.totalorder %s476, 31
      %s480 = scalar_select %p479, %s476, 31
      %s481 = smul.addr %s478, 32
      %s482 = sadd.s32 %s480, %s481
      %s483 = smul.addr %s482, 8
      %s484 = scalar_lea.vmem %s2, %s483
      %s485 = smul.u32 %s25, 4
      %s486 = sadd.s32 %s485, 4
      %p487 = scmp.lt.s32.totalorder %s486, 15
      %s488 = scalar_select %p487, %s486, 15
      %s489 = smul.u32 2, %s488
      %s490 = smul.u32 8, %s25
      %p491 = scmp.lt.s32.totalorder %s24, 1
      %s492 = scalar_select %p491, %s24, 1
      %p493 = scmp.lt.s32.totalorder %s490, 31
      %s494 = scalar_select %p493, %s490, 31
      %s495 = smul.addr %s492, 32
      %s496 = sadd.s32 %s494, %s495
      %s497 = smul.addr %s496, 8
      %s498 = scalar_lea.vmem %s9, %s497
      %s499 = smul.u32 8, %s25
      %v500 = vld [vmem:[%s466] sm:$0xff]
      %v501 = vld [vmem:[%s466 + $0x8] sm:$0xff]
      %v502 = vld [vmem:[%s452] sm:$0xff]
      %v503 = vld [vmem:[%s452 + $0x8] sm:$0xff]
      %v504 = vld [vmem:[%s452 + $0x10] sm:$0xff]
      %v505 = vld [vmem:[%s452 + $0x18] sm:$0xff]
      %v506 = vld [vmem:[%s452 + $0x20] sm:$0xff]
      %v507 = vld [vmem:[%s452 + $0x28] sm:$0xff]
      %v508 = vld [vmem:[%s452 + $0x30] sm:$0xff]
      %v509 = vld [vmem:[%s452 + $0x38] sm:$0xff]
      %v510 = vld [vmem:[%s484] sm:$0xff]
      %v511 = vld [vmem:[%s484 + $0x8] sm:$0xff]
      %v512 = vld [vmem:[%s3] sm:$0xf]
      %v513 = vld [vmem:[%s4] sm:$0x1]
      %v515 = vlaneseq
      %v516 = vshrl.u32 %v515, 7
      %v517 = vsub.s32 0, %v516
      %v518 = vrot.slane %v513, %v517
      %vm520 = vcmask 31744
      %v522 = vsel %vm520, %v500, 0
      %v525 = vsel %vm520, %v501, 0
      %v528 = vsel %vm520, %v502, 0
      %v531 = vsel %vm520, %v503, 0
      %v534 = vsel %vm520, %v504, 0
      %v537 = vsel %vm520, %v505, 0
      %v540 = vsel %vm520, %v506, 0
      %v543 = vsel %vm520, %v507, 0
      %v546 = vsel %vm520, %v508, 0
      %v549 = vsel %vm520, %v509, 0
      %v552 = vsel %vm520, %v510, 0
      %v555 = vsel %vm520, %v511, 0
      %vm557 = vcmask 1043456
      %v559 = vsel %vm557, %v512, 0
      %561 = vmatprep.subr.mxu0 0.0
      %562 = vmatpush1.msra.mxu0 0.0
      %563 = vmatprep.subr.mxu0 0.0
      %564 = vmatpush1.msra.mxu0 0.0
      %565 = vmatprep.subr.mxu0 0.0
      %566 = vmatpush1.msra.mxu0 0.0
      %567 = vmatprep.subr.mxu0 0.0
      %568 = vmatpush1.msra.mxu0 0.0
      %569 = vmatprep.subr.mxu0 0.0
      %570 = vmatpush1.msra.mxu0 0.0
      %571 = vmatprep.subr.mxu0 0.0
      %572 = vmatpush1.msra.mxu0 0.0
      %573 = vmatprep.subr.mxu0 0.0
      %574 = vmatpush1.msra.mxu0 0.0
      %575 = vmatprep.subr.mxu0 0.0
      %576 = vmatpush1.msra.mxu0 0.0
      %577 = vmatprep.subr.mxu0 0.0
      %578 = vmatpush1.msra.mxu0 0.0
      %579 = vmatprep.subr.mxu0 0.0
      %580 = vmatpush1.msra.mxu0 0.0
      %581 = vmatprep.subr.mxu0 0.0
      %582 = vmatpush1.msra.mxu0 0.0
      %583 = vmatprep.subr.mxu0 0.0
      %584 = vmatpush1.msra.mxu0 0.0
      %585 = vmatprep.subr.mxu0 0.0
      %586 = vmatpush1.msra.mxu0 0.0
      %587 = vmatprep.subr.mxu0 0.0
      %588 = vmatpush1.msra.mxu0 0.0
      %589 = vmatprep.subr.mxu0 0.0
      %590 = vmatpush1.msra.mxu0 0.0
      %591 = vmatprep.subr.mxu0 0.0
      %592 = vmatpush1.msra.mxu0 %v559
      %593 = vmatprep.subr.mxu0 0.0
      %594 = vmatpush2.msra.mxu0 0.0
      %595 = vmatprep.subr.mxu0 0.0
      %596 = vmatpush2.msra.mxu0 0.0
      %597 = vmatprep.subr.mxu0 0.0
      %598 = vmatpush2.msra.mxu0 0.0
      %599 = vmatprep.subr.mxu0 0.0
      %600 = vmatpush2.msra.mxu0 0.0
      %601 = vmatprep.subr.mxu0 0.0
      %602 = vmatpush2.msra.mxu0 0.0
      %603 = vmatprep.subr.mxu0 0.0
      %604 = vmatpush2.msra.mxu0 0.0
      %605 = vmatprep.subr.mxu0 0.0
      %606 = vmatpush2.msra.mxu0 0.0
      %607 = vmatprep.subr.mxu0 0.0
      %608 = vmatpush2.msra.mxu0 0.0
      %609 = vmatprep.subr.mxu0 0.0
      %610 = vmatpush2.msra.mxu0 0.0
      %611 = vmatprep.subr.mxu0 0.0
      %612 = vmatpush2.msra.mxu0 0.0
      %613 = vmatprep.subr.mxu0 0.0
      %614 = vmatpush2.msra.mxu0 0.0
      %615 = vmatprep.subr.mxu0 0.0
      %616 = vmatpush2.msra.mxu0 0.0
      %617 = vmatprep.subr.mxu0 0.0
      %618 = vmatpush2.msra.mxu0 0.0
      %619 = vmatprep.subr.mxu0 0.0
      %620 = vmatpush2.msra.mxu0 0.0
      %621 = vmatprep.subr.mxu0 0.0
      %622 = vmatpush2.msra.mxu0 0.0
      %623 = vmatprep.subr.mxu0 0.0
      %624 = vmatpush2.msra.mxu0 0.0
      %625 = vmatprep.mubr.f32.mxu0 0.0
      %626 = vmatmul.mubr.f32.gmra.mxu0 %v522
      %v627 = vpop.f32.mrf.mxu0
      %v628 = vadd.f32 %v518, %v627
      %v629 = vpop.f32.mrf.mxu0
      %630 = vmatprep.mubr.f32.mxu0 0.0
      %631 = vmatmul.mubr.f32.gmra.mxu0 %v525
      %v632 = vpop.f32.mrf.mxu0
      %v633 = vadd.f32 %v518, %v632
      %v634 = vpop.f32.mrf.mxu0
      %635 = vmatprep.mubr.f32.mxu0 0.0
      %636 = vmatmul.mubr.f32.gmra.mxu0 %v528
      %v637 = vpop.f32.mrf.mxu0
      %v638 = vadd.f32 %v518, %v637
      %v639 = vpop.f32.mrf.mxu0
      %640 = vmatprep.mubr.f32.mxu0 0.0
      %641 = vmatmul.mubr.f32.gmra.mxu0 %v531
      %v642 = vpop.f32.mrf.mxu0
      %v643 = vadd.f32 %v518, %v642
      %v644 = vpop.f32.mrf.mxu0
      %645 = vmatprep.mubr.f32.mxu0 0.0
      %646 = vmatmul.mubr.f32.gmra.mxu0 %v534
      %v647 = vpop.f32.mrf.mxu0
      %v648 = vadd.f32 %v518, %v647
      %v649 = vpop.f32.mrf.mxu0
      %650 = vmatprep.mubr.f32.mxu0 0.0
      %651 = vmatmul.mubr.f32.gmra.mxu0 %v537
      %v652 = vpop.f32.mrf.mxu0
      %v653 = vadd.f32 %v518, %v652
      %v654 = vpop.f32.mrf.mxu0
      %655 = vmatprep.mubr.f32.mxu0 0.0
      %656 = vmatmul.mubr.f32.gmra.mxu0 %v540
      %v657 = vpop.f32.mrf.mxu0
      %v658 = vadd.f32 %v518, %v657
      %v659 = vpop.f32.mrf.mxu0
      %660 = vmatprep.mubr.f32.mxu0 0.0
      %661 = vmatmul.mubr.f32.gmra.mxu0 %v543
      %v662 = vpop.f32.mrf.mxu0
      %v663 = vadd.f32 %v518, %v662
      %v664 = vpop.f32.mrf.mxu0
      %665 = vmatprep.mubr.f32.mxu0 0.0
      %666 = vmatmul.mubr.f32.gmra.mxu0 %v546
      %v667 = vpop.f32.mrf.mxu0
      %v668 = vadd.f32 %v518, %v667
      %v669 = vpop.f32.mrf.mxu0
      %670 = vmatprep.mubr.f32.mxu0 0.0
      %671 = vmatmul.mubr.f32.gmra.mxu0 %v549
      %v672 = vpop.f32.mrf.mxu0
      %v673 = vadd.f32 %v518, %v672
      %v674 = vpop.f32.mrf.mxu0
      %675 = vmatprep.mubr.f32.mxu0 0.0
      %676 = vmatmul.mubr.f32.gmra.mxu0 %v552
      %v677 = vpop.f32.mrf.mxu0
      %v678 = vadd.f32 %v518, %v677
      %v679 = vpop.f32.mrf.mxu0
      %680 = vmatprep.mubr.f32.mxu0 0.0
      %681 = vmatmul.mubr.f32.gmra.mxu0 %v555
      %v682 = vpop.f32.mrf.mxu0
      %v683 = vadd.f32 %v518, %v682
      %v684 = vpop.f32.mrf.mxu0
      %685 = vdwg.mxu0
      %v686 = vlaneseq
      %v687 = vshrl.u32 %v686, 7
      %v688 = vadd.s32 %v687, 8
      %v689 = vadd.s32 %v687, 16
      %v690 = vadd.s32 %v687, 24
      %v691 = vadd.s32 %v687, 32
      %v692 = vadd.s32 %v687, 40
      %v693 = vadd.s32 %v687, 48
      %v694 = vadd.s32 %v687, 56
      %v695 = vadd.s32 %v687, 64
      %v696 = vadd.s32 %v687, 72
      %v697 = vadd.s32 %v687, 80
      %v698 = vadd.s32 %v687, 88
      %vm699 = vcmp.ge.s32.totalorder %v687, 16
      %vm700 = vcmp.ge.s32.totalorder %v688, 16
      %vm701 = vcmp.ge.s32.totalorder %v689, 16
      %vm702 = vcmp.ge.s32.totalorder %v690, 16
      %vm703 = vcmp.ge.s32.totalorder %v691, 16
      %vm704 = vcmp.ge.s32.totalorder %v692, 16
      %vm705 = vcmp.ge.s32.totalorder %v693, 16
      %vm706 = vcmp.ge.s32.totalorder %v694, 16
      %vm707 = vcmp.ge.s32.totalorder %v695, 16
      %vm708 = vcmp.ge.s32.totalorder %v696, 16
      %vm709 = vcmp.ge.s32.totalorder %v697, 16
      %vm710 = vcmp.ge.s32.totalorder %v698, 16
      %p711 = scmp.gt.s32.totalorder %s25, 0
      %s712 = scalar_select %p711, 1, 0
      %v713 = vstv %s712
      %vm714 = vcmp.eq.s32.totalorder %v713, 1
      %vm715 = vmor %vm699, %vm714
      %vm716 = vmor %vm700, %vm714
      %vm717 = vmor %vm701, %vm714
      %vm718 = vmor %vm702, %vm714
      %vm719 = vmor %vm703, %vm714
      %vm720 = vmor %vm704, %vm714
      %vm721 = vmor %vm705, %vm714
      %vm722 = vmor %vm706, %vm714
      %vm723 = vmor %vm707, %vm714
      %vm724 = vmor %vm708, %vm714
      %vm725 = vmor %vm709, %vm714
      %vm726 = vmor %vm710, %vm714
      %vm727 = vcmp.lt.s32.totalorder %v687, 80
      %vm728 = vcmp.lt.s32.totalorder %v688, 80
      %vm729 = vcmp.lt.s32.totalorder %v689, 80
      %vm730 = vcmp.lt.s32.totalorder %v690, 80
      %vm731 = vcmp.lt.s32.totalorder %v691, 80
      %vm732 = vcmp.lt.s32.totalorder %v692, 80
      %vm733 = vcmp.lt.s32.totalorder %v693, 80
      %vm734 = vcmp.lt.s32.totalorder %v694, 80
      %vm735 = vcmp.lt.s32.totalorder %v695, 80
      %vm736 = vcmp.lt.s32.totalorder %v696, 80
      %vm737 = vcmp.lt.s32.totalorder %v697, 80
      %vm738 = vcmp.lt.s32.totalorder %v698, 80
      %p739 = scmp.lt.s32.totalorder %s25, 3
      %s740 = scalar_select %p739, 1, 0
      %v741 = vstv %s740
      %vm742 = vcmp.eq.s32.totalorder %v741, 1
      %vm743 = vmor %vm727, %vm742
      %vm744 = vmor %vm728, %vm742
      %vm745 = vmor %vm729, %vm742
      %vm746 = vmor %vm730, %vm742
      %vm747 = vmor %vm731, %vm742
      %vm748 = vmor %vm732, %vm742
      %vm749 = vmor %vm733, %vm742
      %vm750 = vmor %vm734, %vm742
      %vm751 = vmor %vm735, %vm742
      %vm752 = vmor %vm736, %vm742
      %vm753 = vmor %vm737, %vm742
      %vm754 = vmor %vm738, %vm742
      %vm755 = vmand %vm715, %vm743
      %vm756 = vmand %vm716, %vm744
      %vm757 = vmand %vm717, %vm745
      %vm758 = vmand %vm718, %vm746
      %vm759 = vmand %vm719, %vm747
      %vm760 = vmand %vm720, %vm748
      %vm761 = vmand %vm721, %vm749
      %vm762 = vmand %vm722, %vm750
      %vm763 = vmand %vm723, %vm751
      %vm764 = vmand %vm724, %vm752
      %vm765 = vmand %vm725, %vm753
      %vm766 = vmand %vm726, %vm754
      %v767 = vsel %vm755, 1, 0
      %v768 = vsel %vm756, 1, 0
      %v769 = vsel %vm757, 1, 0
      %v770 = vsel %vm758, 1, 0
      %v771 = vsel %vm759, 1, 0
      %v772 = vsel %vm760, 1, 0
      %v773 = vsel %vm761, 1, 0
      %v774 = vsel %vm762, 1, 0
      %v775 = vsel %vm763, 1, 0
      %v776 = vsel %vm764, 1, 0
      %v777 = vsel %vm765, 1, 0
      %v778 = vsel %vm766, 1, 0
      %vm779 = vcmp.eq.s32.totalorder %v767, 1
      %vm780 = vcmp.eq.s32.totalorder %v768, 1
      %vm781 = vcmp.eq.s32.totalorder %v769, 1
      %vm782 = vcmp.eq.s32.totalorder %v770, 1
      %vm783 = vcmp.eq.s32.totalorder %v771, 1
      %vm784 = vcmp.eq.s32.totalorder %v772, 1
      %vm785 = vcmp.eq.s32.totalorder %v773, 1
      %vm786 = vcmp.eq.s32.totalorder %v774, 1
      %vm787 = vcmp.eq.s32.totalorder %v775, 1
      %vm788 = vcmp.eq.s32.totalorder %v776, 1
      %vm789 = vcmp.eq.s32.totalorder %v777, 1
      %vm790 = vcmp.eq.s32.totalorder %v778, 1
      %v791 = vsel %vm779, %v628, 0.0
      %v792 = vsel %vm780, %v633, 0.0
      %v793 = vsel %vm781, %v638, 0.0
      %v794 = vsel %vm782, %v643, 0.0
      %v795 = vsel %vm783, %v648, 0.0
      %v796 = vsel %vm784, %v653, 0.0
      %v797 = vsel %vm785, %v658, 0.0
      %v798 = vsel %vm786, %v663, 0.0
      %v799 = vsel %vm787, %v668, 0.0
      %v800 = vsel %vm788, %v673, 0.0
      %v801 = vsel %vm789, %v678, 0.0
      %v802 = vsel %vm790, %v683, 0.0
      %vm803 = vcmp.lt.s32.totalorder %v687, 0
      %v804 = vsub.s32 0, %v687
      %v805 = vsel %vm803, %v804, %v687
      %v806 = vshrl.u32 %v805, 4
      %v807 = vand.u32 %v805, 15
      %v808 = vsub.s32 0, %v807
      %v809 = vsel %vm803, %v808, %v807
      %vm810 = vcmp.lt.s32.totalorder %v688, 0
      %v811 = vsub.s32 0, %v688
      %v812 = vsel %vm810, %v811, %v688
      %v813 = vshrl.u32 %v812, 4
      %v814 = vand.u32 %v812, 15
      %v815 = vsub.s32 0, %v814
      %v816 = vsel %vm810, %v815, %v814
      %vm817 = vcmp.lt.s32.totalorder %v689, 0
      %v818 = vsub.s32 0, %v689
      %v819 = vsel %vm817, %v818, %v689
      %v820 = vshrl.u32 %v819, 4
      %v821 = vand.u32 %v819, 15
      %v822 = vsub.s32 0, %v821
      %v823 = vsel %vm817, %v822, %v821
      %vm824 = vcmp.lt.s32.totalorder %v690, 0
      %v825 = vsub.s32 0, %v690
      %v826 = vsel %vm824, %v825, %v690
      %v827 = vshrl.u32 %v826, 4
      %v828 = vand.u32 %v826, 15
      %v829 = vsub.s32 0, %v828
      %v830 = vsel %vm824, %v829, %v828
      %vm831 = vcmp.lt.s32.totalorder %v691, 0
      %v832 = vsub.s32 0, %v691
      %v833 = vsel %vm831, %v832, %v691
      %v834 = vshrl.u32 %v833, 4
      %v835 = vand.u32 %v833, 15
      %v836 = vsub.s32 0, %v835
      %v837 = vsel %vm831, %v836, %v835
      %vm838 = vcmp.lt.s32.totalorder %v692, 0
      %v839 = vsub.s32 0, %v692
      %v840 = vsel %vm838, %v839, %v692
      %v841 = vshrl.u32 %v840, 4
      %v842 = vand.u32 %v840, 15
      %v843 = vsub.s32 0, %v842
      %v844 = vsel %vm838, %v843, %v842
      %vm845 = vcmp.lt.s32.totalorder %v693, 0
      %v846 = vsub.s32 0, %v693
      %v847 = vsel %vm845, %v846, %v693
      %v848 = vshrl.u32 %v847, 4
      %v849 = vand.u32 %v847, 15
      %v850 = vsub.s32 0, %v849
      %v851 = vsel %vm845, %v850, %v849
      %vm852 = vcmp.lt.s32.totalorder %v694, 0
      %v853 = vsub.s32 0, %v694
      %v854 = vsel %vm852, %v853, %v694
      %v855 = vshrl.u32 %v854, 4
      %v856 = vand.u32 %v854, 15
      %v857 = vsub.s32 0, %v856
      %v858 = vsel %vm852, %v857, %v856
      %vm859 = vcmp.lt.s32.totalorder %v695, 0
      %v860 = vsub.s32 0, %v695
      %v861 = vsel %vm859, %v860, %v695
      %v862 = vshrl.u32 %v861, 4
      %v863 = vand.u32 %v861, 15
      %v864 = vsub.s32 0, %v863
      %v865 = vsel %vm859, %v864, %v863
      %vm866 = vcmp.lt.s32.totalorder %v696, 0
      %v867 = vsub.s32 0, %v696
      %v868 = vsel %vm866, %v867, %v696
      %v869 = vshrl.u32 %v868, 4
      %v870 = vand.u32 %v868, 15
      %v871 = vsub.s32 0, %v870
      %v872 = vsel %vm866, %v871, %v870
      %vm873 = vcmp.lt.s32.totalorder %v697, 0
      %v874 = vsub.s32 0, %v697
      %v875 = vsel %vm873, %v874, %v697
      %v876 = vshrl.u32 %v875, 4
      %v877 = vand.u32 %v875, 15
      %v878 = vsub.s32 0, %v877
      %v879 = vsel %vm873, %v878, %v877
      %vm880 = vcmp.lt.s32.totalorder %v698, 0
      %v881 = vsub.s32 0, %v698
      %v882 = vsel %vm880, %v881, %v698
      %v883 = vshrl.u32 %v882, 4
      %v884 = vand.u32 %v882, 15
      %v885 = vsub.s32 0, %v884
      %v886 = vsel %vm880, %v885, %v884
      %vm887 = vcmp.ne.s32.totalorder %v809, 0
      %vm888 = vcmp.ne.s32.totalorder %v816, 0
      %vm889 = vcmp.ne.s32.totalorder %v823, 0
      %vm890 = vcmp.ne.s32.totalorder %v830, 0
      %vm891 = vcmp.ne.s32.totalorder %v837, 0
      %vm892 = vcmp.ne.s32.totalorder %v844, 0
      %vm893 = vcmp.ne.s32.totalorder %v851, 0
      %vm894 = vcmp.ne.s32.totalorder %v858, 0
      %vm895 = vcmp.ne.s32.totalorder %v865, 0
      %vm896 = vcmp.ne.s32.totalorder %v872, 0
      %vm897 = vcmp.ne.s32.totalorder %v879, 0
      %vm898 = vcmp.ne.s32.totalorder %v886, 0
      %vm899 = vcmp.lt.s32.totalorder %v809, 0
      %vm900 = vcmp.lt.s32.totalorder %v816, 0
      %vm901 = vcmp.lt.s32.totalorder %v823, 0
      %vm902 = vcmp.lt.s32.totalorder %v830, 0
      %vm903 = vcmp.lt.s32.totalorder %v837, 0
      %vm904 = vcmp.lt.s32.totalorder %v844, 0
      %vm905 = vcmp.lt.s32.totalorder %v851, 0
      %vm906 = vcmp.lt.s32.totalorder %v858, 0
      %vm907 = vcmp.lt.s32.totalorder %v865, 0
      %vm908 = vcmp.lt.s32.totalorder %v872, 0
      %vm909 = vcmp.lt.s32.totalorder %v879, 0
      %vm910 = vcmp.lt.s32.totalorder %v886, 0
      %vm911 = vmand %vm899, %vm887
      %vm912 = vmand %vm900, %vm888
      %vm913 = vmand %vm901, %vm889
      %vm914 = vmand %vm902, %vm890
      %vm915 = vmand %vm903, %vm891
      %vm916 = vmand %vm904, %vm892
      %vm917 = vmand %vm905, %vm893
      %vm918 = vmand %vm906, %vm894
      %vm919 = vmand %vm907, %vm895
      %vm920 = vmand %vm908, %vm896
      %vm921 = vmand %vm909, %vm897
      %vm922 = vmand %vm910, %vm898
      %v923 = vadd.s32 %v809, 16
      %v924 = vadd.s32 %v816, 16
      %v925 = vadd.s32 %v823, 16
      %v926 = vadd.s32 %v830, 16
      %v927 = vadd.s32 %v837, 16
      %v928 = vadd.s32 %v844, 16
      %v929 = vadd.s32 %v851, 16
      %v930 = vadd.s32 %v858, 16
      %v931 = vadd.s32 %v865, 16
      %v932 = vadd.s32 %v872, 16
      %v933 = vadd.s32 %v879, 16
      %v934 = vadd.s32 %v886, 16
      %v935 = vsel %vm911, %v923, %v809
      %v936 = vsel %vm912, %v924, %v816
      %v937 = vsel %vm913, %v925, %v823
      %v938 = vsel %vm914, %v926, %v830
      %v939 = vsel %vm915, %v927, %v837
      %v940 = vsel %vm916, %v928, %v844
      %v941 = vsel %vm917, %v929, %v851
      %v942 = vsel %vm918, %v930, %v858
      %v943 = vsel %vm919, %v931, %v865
      %v944 = vsel %vm920, %v932, %v872
      %v945 = vsel %vm921, %v933, %v879
      %v946 = vsel %vm922, %v934, %v886
      %v947 = vld [vmem:[%s5] sm:$0xff]
      %v948 = vld [vmem:[%s5 + $0x8] sm:$0x1]
      %v949 = vrot.slane %v791, 7
      %v950 = vrot.slane %v792, 7
      %v951 = vrot.slane %v793, 7
      %v952 = vrot.slane %v794, 7
      %v953 = vrot.slane %v795, 7
      %v954 = vrot.slane %v796, 7
      %v955 = vrot.slane %v797, 7
      %v956 = vrot.slane %v798, 7
      %v957 = vrot.slane %v799, 7
      %v958 = vrot.slane %v800, 7
      %v959 = vrot.slane %v801, 7
      %v960 = vrot.slane %v802, 7
      %vm961 = vcmp.lt.s32.totalorder %v687, 1
      %v962 = vsel %vm961, %v959, %v960
      %v963 = vsel %vm961, %v958, %v959
      %v964 = vsel %vm961, %v957, %v958
      %v965 = vsel %vm961, %v956, %v957
      %v966 = vsel %vm961, %v955, %v956
      %v967 = vsel %vm961, %v954, %v955
      %v968 = vsel %vm961, %v953, %v954
      %v969 = vsel %vm961, %v952, %v953
      %v970 = vsel %vm961, %v951, %v952
      %v971 = vsel %vm961, %v950, %v951
      %v972 = vsel %vm961, %v949, %v950
      %v973 = vsel %vm961, %v960, %v949
      %vm974 = vcmp.ge.s32.totalorder %v935, 1
      %vm975 = vcmp.ge.s32.totalorder %v936, 1
      %vm976 = vcmp.ge.s32.totalorder %v937, 1
      %vm977 = vcmp.ge.s32.totalorder %v938, 1
      %vm978 = vcmp.ge.s32.totalorder %v939, 1
      %vm979 = vcmp.ge.s32.totalorder %v940, 1
      %vm980 = vcmp.ge.s32.totalorder %v941, 1
      %vm981 = vcmp.ge.s32.totalorder %v942, 1
      %vm982 = vcmp.ge.s32.totalorder %v943, 1
      %vm983 = vcmp.ge.s32.totalorder %v944, 1
      %vm984 = vcmp.ge.s32.totalorder %v945, 1
      %vm985 = vcmp.ge.s32.totalorder %v946, 1
      %v986 = vsel %vm974, 1, 0
      %v987 = vsel %vm975, 1, 0
      %v988 = vsel %vm976, 1, 0
      %v989 = vsel %vm977, 1, 0
      %v990 = vsel %vm978, 1, 0
      %v991 = vsel %vm979, 1, 0
      %v992 = vsel %vm980, 1, 0
      %v993 = vsel %vm981, 1, 0
      %v994 = vsel %vm982, 1, 0
      %v995 = vsel %vm983, 1, 0
      %v996 = vsel %vm984, 1, 0
      %v997 = vsel %vm985, 1, 0
      %vm998 = vcmp.eq.s32.totalorder %v986, 1
      %vm999 = vcmp.eq.s32.totalorder %v987, 1
      %vm1000 = vcmp.eq.s32.totalorder %v988, 1
      %vm1001 = vcmp.eq.s32.totalorder %v989, 1
      %vm1002 = vcmp.eq.s32.totalorder %v990, 1
      %vm1003 = vcmp.eq.s32.totalorder %v991, 1
      %vm1004 = vcmp.eq.s32.totalorder %v992, 1
      %vm1005 = vcmp.eq.s32.totalorder %v993, 1
      %vm1006 = vcmp.eq.s32.totalorder %v994, 1
      %vm1007 = vcmp.eq.s32.totalorder %v995, 1
      %vm1008 = vcmp.eq.s32.totalorder %v996, 1
      %vm1009 = vcmp.eq.s32.totalorder %v997, 1
      %v1010 = vsel %vm998, %v973, 0.0
      %v1011 = vsel %vm999, %v972, 0.0
      %v1012 = vsel %vm1000, %v971, 0.0
      %v1013 = vsel %vm1001, %v970, 0.0
      %v1014 = vsel %vm1002, %v969, 0.0
      %v1015 = vsel %vm1003, %v968, 0.0
      %v1016 = vsel %vm1004, %v967, 0.0
      %v1017 = vsel %vm1005, %v966, 0.0
      %v1018 = vsel %vm1006, %v965, 0.0
      %v1019 = vsel %vm1007, %v964, 0.0
      %v1020 = vsel %vm1008, %v963, 0.0
      %v1021 = vsel %vm1009, %v962, 0.0
      %v1022 = vlaneseq
      %v1023 = vshrl.u32 %v1022, 7
      %v1024 = vsub.s32 0, %v1023
      %v1025 = vrot.slane %v947, %v1024
      %v1026 = vmul.f32 %v1010, %v1025
      %v1027 = vmul.f32 %v1011, %v1025
      %v1028 = vmul.f32 %v1012, %v1025
      %v1029 = vmul.f32 %v1013, %v1025
      %v1030 = vmul.f32 %v1014, %v1025
      %v1031 = vmul.f32 %v1015, %v1025
      %v1032 = vmul.f32 %v1016, %v1025
      %v1033 = vmul.f32 %v1017, %v1025
      %v1034 = vld [vmem:[%s6] sm:$0x1]
      %v1036 = vlaneseq
      %v1037 = vshrl.u32 %v1036, 7
      %v1038 = vsub.s32 0, %v1037
      %v1039 = vrot.slane %v1034, %v1038
      %v1041 = vadd.f32 %v1026, %v1039
      %v1042 = vadd.f32 %v1027, %v1039
      %v1043 = vadd.f32 %v1028, %v1039
      %v1044 = vadd.f32 %v1029, %v1039
      %v1045 = vadd.f32 %v1030, %v1039
      %v1046 = vadd.f32 %v1031, %v1039
      %v1047 = vadd.f32 %v1032, %v1039
      %v1048 = vadd.f32 %v1033, %v1039
      %v1049 = vlaneseq
      %v1050 = vshrl.u32 %v1049, 7
      %v1051 = vsub.s32 3, %v1050
      %v1052 = vrot.slane %v947, %v1051
      %v1053 = vmul.f32 %v1012, %v1052
      %v1054 = vmul.f32 %v1013, %v1052
      %v1055 = vmul.f32 %v1014, %v1052
      %v1056 = vmul.f32 %v1015, %v1052
      %v1057 = vmul.f32 %v1016, %v1052
      %v1058 = vmul.f32 %v1017, %v1052
      %v1059 = vmul.f32 %v1018, %v1052
      %v1060 = vmul.f32 %v1019, %v1052
      %v1061 = vadd.f32 %v1041, %v1053
      %v1062 = vadd.f32 %v1042, %v1054
      %v1063 = vadd.f32 %v1043, %v1055
      %v1064 = vadd.f32 %v1044, %v1056
      %v1065 = vadd.f32 %v1045, %v1057
      %v1066 = vadd.f32 %v1046, %v1058
      %v1067 = vadd.f32 %v1047, %v1059
      %v1068 = vadd.f32 %v1048, %v1060
      %v1069 = vlaneseq
      %v1070 = vshrl.u32 %v1069, 7
      %v1071 = vsub.s32 6, %v1070
      %v1072 = vrot.slane %v947, %v1071
      %v1073 = vmul.f32 %v1014, %v1072
      %v1074 = vmul.f32 %v1015, %v1072
      %v1075 = vmul.f32 %v1016, %v1072
      %v1076 = vmul.f32 %v1017, %v1072
      %v1077 = vmul.f32 %v1018, %v1072
      %v1078 = vmul.f32 %v1019, %v1072
      %v1079 = vmul.f32 %v1020, %v1072
      %v1080 = vmul.f32 %v1021, %v1072
      %v1081 = vadd.f32 %v1061, %v1073
      %v1082 = vadd.f32 %v1062, %v1074
      %v1083 = vadd.f32 %v1063, %v1075
      %v1084 = vadd.f32 %v1064, %v1076
      %v1085 = vadd.f32 %v1065, %v1077
      %v1086 = vadd.f32 %v1066, %v1078
      %v1087 = vadd.f32 %v1067, %v1079
      %v1088 = vadd.f32 %v1068, %v1080
      %v1089 = vlaneseq
      %v1090 = vshrl.u32 %v1089, 7
      %v1091 = vsub.s32 1, %v1090
      %v1092 = vrot.slane %v947, %v1091
      %v1093 = vmul.f32 %v791, %v1092
      %v1094 = vmul.f32 %v792, %v1092
      %v1095 = vmul.f32 %v793, %v1092
      %v1096 = vmul.f32 %v794, %v1092
      %v1097 = vmul.f32 %v795, %v1092
      %v1098 = vmul.f32 %v796, %v1092
      %v1099 = vmul.f32 %v797, %v1092
      %v1100 = vmul.f32 %v798, %v1092
      %v1101 = vadd.f32 %v1081, %v1093
      %v1102 = vadd.f32 %v1082, %v1094
      %v1103 = vadd.f32 %v1083, %v1095
      %v1104 = vadd.f32 %v1084, %v1096
      %v1105 = vadd.f32 %v1085, %v1097
      %v1106 = vadd.f32 %v1086, %v1098
      %v1107 = vadd.f32 %v1087, %v1099
      %v1108 = vadd.f32 %v1088, %v1100
      %v1109 = vlaneseq
      %v1110 = vshrl.u32 %v1109, 7
      %v1111 = vsub.s32 4, %v1110
      %v1112 = vrot.slane %v947, %v1111
      %v1113 = vmul.f32 %v793, %v1112
      %v1114 = vmul.f32 %v794, %v1112
      %v1115 = vmul.f32 %v795, %v1112
      %v1116 = vmul.f32 %v796, %v1112
      %v1117 = vmul.f32 %v797, %v1112
      %v1118 = vmul.f32 %v798, %v1112
      %v1119 = vmul.f32 %v799, %v1112
      %v1120 = vmul.f32 %v800, %v1112
      %v1121 = vadd.f32 %v1101, %v1113
      %v1122 = vadd.f32 %v1102, %v1114
      %v1123 = vadd.f32 %v1103, %v1115
      %v1124 = vadd.f32 %v1104, %v1116
      %v1125 = vadd.f32 %v1105, %v1117
      %v1126 = vadd.f32 %v1106, %v1118
      %v1127 = vadd.f32 %v1107, %v1119
      %v1128 = vadd.f32 %v1108, %v1120
      %v1129 = vlaneseq
      %v1130 = vshrl.u32 %v1129, 7
      %v1131 = vsub.s32 7, %v1130
      %v1132 = vrot.slane %v947, %v1131
      %v1133 = vmul.f32 %v795, %v1132
      %v1134 = vmul.f32 %v796, %v1132
      %v1135 = vmul.f32 %v797, %v1132
      %v1136 = vmul.f32 %v798, %v1132
      %v1137 = vmul.f32 %v799, %v1132
      %v1138 = vmul.f32 %v800, %v1132
      %v1139 = vmul.f32 %v801, %v1132
      %v1140 = vmul.f32 %v802, %v1132
      %v1141 = vadd.f32 %v1121, %v1133
      %v1142 = vadd.f32 %v1122, %v1134
      %v1143 = vadd.f32 %v1123, %v1135
      %v1144 = vadd.f32 %v1124, %v1136
      %v1145 = vadd.f32 %v1125, %v1137
      %v1146 = vadd.f32 %v1126, %v1138
      %v1147 = vadd.f32 %v1127, %v1139
      %v1148 = vadd.f32 %v1128, %v1140
      %v1149 = vrot.slane %v791, 1
      %v1150 = vrot.slane %v792, 1
      %v1151 = vrot.slane %v793, 1
      %v1152 = vrot.slane %v794, 1
      %v1153 = vrot.slane %v795, 1
      %v1154 = vrot.slane %v796, 1
      %v1155 = vrot.slane %v797, 1
      %v1156 = vrot.slane %v798, 1
      %v1157 = vrot.slane %v799, 1
      %v1158 = vrot.slane %v800, 1
      %v1159 = vrot.slane %v801, 1
      %v1160 = vrot.slane %v802, 1
      %vm1161 = vcmp.lt.s32.totalorder %v687, 7
      %v1162 = vsel %vm1161, %v1159, %v1160
      %v1163 = vsel %vm1161, %v1158, %v1159
      %v1164 = vsel %vm1161, %v1157, %v1158
      %v1165 = vsel %vm1161, %v1156, %v1157
      %v1166 = vsel %vm1161, %v1155, %v1156
      %v1167 = vsel %vm1161, %v1154, %v1155
      %v1168 = vsel %vm1161, %v1153, %v1154
      %v1169 = vsel %vm1161, %v1152, %v1153
      %v1170 = vsel %vm1161, %v1151, %v1152
      %v1171 = vsel %vm1161, %v1150, %v1151
      %v1172 = vsel %vm1161, %v1149, %v1150
      %v1173 = vsel %vm1161, %v1160, %v1149
      %vm1174 = vcmp.le.s32.totalorder %v935, 14
      %vm1175 = vcmp.le.s32.totalorder %v936, 14
      %vm1176 = vcmp.le.s32.totalorder %v937, 14
      %vm1177 = vcmp.le.s32.totalorder %v938, 14
      %vm1178 = vcmp.le.s32.totalorder %v939, 14
      %vm1179 = vcmp.le.s32.totalorder %v940, 14
      %vm1180 = vcmp.le.s32.totalorder %v941, 14
      %vm1181 = vcmp.le.s32.totalorder %v942, 14
      %vm1182 = vcmp.le.s32.totalorder %v943, 14
      %vm1183 = vcmp.le.s32.totalorder %v944, 14
      %vm1184 = vcmp.le.s32.totalorder %v945, 14
      %vm1185 = vcmp.le.s32.totalorder %v946, 14
      %v1186 = vsel %vm1174, 1, 0
      %v1187 = vsel %vm1175, 1, 0
      %v1188 = vsel %vm1176, 1, 0
      %v1189 = vsel %vm1177, 1, 0
      %v1190 = vsel %vm1178, 1, 0
      %v1191 = vsel %vm1179, 1, 0
      %v1192 = vsel %vm1180, 1, 0
      %v1193 = vsel %vm1181, 1, 0
      %v1194 = vsel %vm1182, 1, 0
      %v1195 = vsel %vm1183, 1, 0
      %v1196 = vsel %vm1184, 1, 0
      %v1197 = vsel %vm1185, 1, 0
      %vm1198 = vcmp.eq.s32.totalorder %v1186, 1
      %vm1199 = vcmp.eq.s32.totalorder %v1187, 1
      %vm1200 = vcmp.eq.s32.totalorder %v1188, 1
      %vm1201 = vcmp.eq.s32.totalorder %v1189, 1
      %vm1202 = vcmp.eq.s32.totalorder %v1190, 1
      %vm1203 = vcmp.eq.s32.totalorder %v1191, 1
      %vm1204 = vcmp.eq.s32.totalorder %v1192, 1
      %vm1205 = vcmp.eq.s32.totalorder %v1193, 1
      %vm1206 = vcmp.eq.s32.totalorder %v1194, 1
      %vm1207 = vcmp.eq.s32.totalorder %v1195, 1
      %vm1208 = vcmp.eq.s32.totalorder %v1196, 1
      %vm1209 = vcmp.eq.s32.totalorder %v1197, 1
      %v1210 = vsel %vm1198, %v1172, 0.0
      %v1211 = vsel %vm1199, %v1171, 0.0
      %v1212 = vsel %vm1200, %v1170, 0.0
      %v1213 = vsel %vm1201, %v1169, 0.0
      %v1214 = vsel %vm1202, %v1168, 0.0
      %v1215 = vsel %vm1203, %v1167, 0.0
      %v1216 = vsel %vm1204, %v1166, 0.0
      %v1217 = vsel %vm1205, %v1165, 0.0
      %v1218 = vsel %vm1206, %v1164, 0.0
      %v1219 = vsel %vm1207, %v1163, 0.0
      %v1220 = vsel %vm1208, %v1162, 0.0
      %v1221 = vsel %vm1209, %v1173, 0.0
      %v1222 = vlaneseq
      %v1223 = vshrl.u32 %v1222, 7
      %v1224 = vsub.s32 2, %v1223
      %v1225 = vrot.slane %v947, %v1224
      %v1226 = vmul.f32 %v1210, %v1225
      %v1227 = vmul.f32 %v1211, %v1225
      %v1228 = vmul.f32 %v1212, %v1225
      %v1229 = vmul.f32 %v1213, %v1225
      %v1230 = vmul.f32 %v1214, %v1225
      %v1231 = vmul.f32 %v1215, %v1225
      %v1232 = vmul.f32 %v1216, %v1225
      %v1233 = vmul.f32 %v1217, %v1225
      %v1234 = vadd.f32 %v1141, %v1226
      %v1235 = vadd.f32 %v1142, %v1227
      %v1236 = vadd.f32 %v1143, %v1228
      %v1237 = vadd.f32 %v1144, %v1229
      %v1238 = vadd.f32 %v1145, %v1230
      %v1239 = vadd.f32 %v1146, %v1231
      %v1240 = vadd.f32 %v1147, %v1232
      %v1241 = vadd.f32 %v1148, %v1233
      %v1242 = vlaneseq
      %v1243 = vshrl.u32 %v1242, 7
      %v1244 = vsub.s32 5, %v1243
      %v1245 = vrot.slane %v947, %v1244
      %v1246 = vmul.f32 %v1212, %v1245
      %v1247 = vmul.f32 %v1213, %v1245
      %v1248 = vmul.f32 %v1214, %v1245
      %v1249 = vmul.f32 %v1215, %v1245
      %v1250 = vmul.f32 %v1216, %v1245
      %v1251 = vmul.f32 %v1217, %v1245
      %v1252 = vmul.f32 %v1218, %v1245
      %v1253 = vmul.f32 %v1219, %v1245
      %v1254 = vadd.f32 %v1234, %v1246
      %v1255 = vadd.f32 %v1235, %v1247
      %v1256 = vadd.f32 %v1236, %v1248
      %v1257 = vadd.f32 %v1237, %v1249
      %v1258 = vadd.f32 %v1238, %v1250
      %v1259 = vadd.f32 %v1239, %v1251
      %v1260 = vadd.f32 %v1240, %v1252
      %v1261 = vadd.f32 %v1241, %v1253
      %v1262 = vlaneseq
      %v1263 = vshrl.u32 %v1262, 7
      %v1264 = vsub.s32 0, %v1263
      %v1265 = vrot.slane %v948, %v1264
      %v1266 = vmul.f32 %v1214, %v1265
      %v1267 = vmul.f32 %v1215, %v1265
      %v1268 = vmul.f32 %v1216, %v1265
      %v1269 = vmul.f32 %v1217, %v1265
      %v1270 = vmul.f32 %v1218, %v1265
      %v1271 = vmul.f32 %v1219, %v1265
      %v1272 = vmul.f32 %v1220, %v1265
      %v1273 = vmul.f32 %v1221, %v1265
      %v1274 = vadd.f32 %v1254, %v1266
      %v1275 = vadd.f32 %v1255, %v1267
      %v1276 = vadd.f32 %v1256, %v1268
      %v1277 = vadd.f32 %v1257, %v1269
      %v1278 = vadd.f32 %v1258, %v1270
      %v1279 = vadd.f32 %v1259, %v1271
      %v1280 = vadd.f32 %v1260, %v1272
      %v1281 = vadd.f32 %v1261, %v1273
      %v1282 = vmul.f32 %v1274, 0.70710677
      %v1283 = vmul.f32 %v1275, 0.70710677
      %v1284 = vmul.f32 %v1276, 0.70710677
      %v1285 = vmul.f32 %v1277, 0.70710677
      %v1286 = vmul.f32 %v1278, 0.70710677
      %v1287 = vmul.f32 %v1279, 0.70710677
      %v1288 = vmul.f32 %v1280, 0.70710677
      %v1289 = vmul.f32 %v1281, 0.70710677
      %v1290 = vand.u32 2147483647, %v1282
      %v1291 = vand.u32 2147483647, %v1283
      %v1292 = vand.u32 2147483647, %v1284
      %v1293 = vand.u32 2147483647, %v1285
      %v1294 = vand.u32 2147483647, %v1286
      %v1295 = vand.u32 2147483647, %v1287
      %v1296 = vand.u32 2147483647, %v1288
      %v1297 = vand.u32 2147483647, %v1289
      %v1298 = vmul.f32 %v1290, 1.4142135
      %v1299 = vmul.f32 %v1291, 1.4142135
      %v1300 = vmul.f32 %v1292, 1.4142135
      %v1301 = vmul.f32 %v1293, 1.4142135
      %v1302 = vmul.f32 %v1294, 1.4142135
      %v1303 = vmul.f32 %v1295, 1.4142135
      %v1304 = vmul.f32 %v1296, 1.4142135
      %v1305 = vmul.f32 %v1297, 1.4142135
      %v1306 = vmul.f32 %v1290, 0.3275911
      %v1307 = vmul.f32 %v1291, 0.3275911
      %v1308 = vmul.f32 %v1292, 0.3275911
      %v1309 = vmul.f32 %v1293, 0.3275911
      %v1310 = vmul.f32 %v1294, 0.3275911
      %v1311 = vmul.f32 %v1295, 0.3275911
      %v1312 = vmul.f32 %v1296, 0.3275911
      %v1313 = vmul.f32 %v1297, 0.3275911
      %v1314 = vadd.f32 %v1306, 1.0
      %v1315 = vadd.f32 %v1307, 1.0
      %v1316 = vadd.f32 %v1308, 1.0
      %v1317 = vadd.f32 %v1309, 1.0
      %v1318 = vadd.f32 %v1310, 1.0
      %v1319 = vadd.f32 %v1311, 1.0
      %v1320 = vadd.f32 %v1312, 1.0
      %v1321 = vadd.f32 %v1313, 1.0
      %v1322 = vrcp.pop %v1314
      %v1323 = vrcp.pop %v1315
      %v1324 = vrcp.pop %v1316
      %v1325 = vrcp.pop %v1317
      %v1326 = vrcp.pop %v1318
      %v1327 = vrcp.pop %v1319
      %v1328 = vrcp.pop %v1320
      %v1329 = vrcp.pop %v1321
      %v1330 = vmul.f32 %v1322, 1.0614054
      %v1331 = vmul.f32 %v1323, 1.0614054
      %v1332 = vmul.f32 %v1324, 1.0614054
      %v1333 = vmul.f32 %v1325, 1.0614054
      %v1334 = vmul.f32 %v1326, 1.0614054
      %v1335 = vmul.f32 %v1327, 1.0614054
      %v1336 = vmul.f32 %v1328, 1.0614054
      %v1337 = vmul.f32 %v1329, 1.0614054
      %v1338 = vadd.f32 %v1330, -1.4531521
      %v1339 = vadd.f32 %v1331, -1.4531521
      %v1340 = vadd.f32 %v1332, -1.4531521
      %v1341 = vadd.f32 %v1333, -1.4531521
      %v1342 = vadd.f32 %v1334, -1.4531521
      %v1343 = vadd.f32 %v1335, -1.4531521
      %v1344 = vadd.f32 %v1336, -1.4531521
      %v1345 = vadd.f32 %v1337, -1.4531521
      %v1346 = vmul.f32 %v1322, %v1338
      %v1347 = vmul.f32 %v1323, %v1339
      %v1348 = vmul.f32 %v1324, %v1340
      %v1349 = vmul.f32 %v1325, %v1341
      %v1350 = vmul.f32 %v1326, %v1342
      %v1351 = vmul.f32 %v1327, %v1343
      %v1352 = vmul.f32 %v1328, %v1344
      %v1353 = vmul.f32 %v1329, %v1345
      %v1354 = vadd.f32 %v1346, 1.4214138
      %v1355 = vadd.f32 %v1347, 1.4214138
      %v1356 = vadd.f32 %v1348, 1.4214138
      %v1357 = vadd.f32 %v1349, 1.4214138
      %v1358 = vadd.f32 %v1350, 1.4214138
      %v1359 = vadd.f32 %v1351, 1.4214138
      %v1360 = vadd.f32 %v1352, 1.4214138
      %v1361 = vadd.f32 %v1353, 1.4214138
      %v1362 = vmul.f32 %v1322, %v1354
      %v1363 = vmul.f32 %v1323, %v1355
      %v1364 = vmul.f32 %v1324, %v1356
      %v1365 = vmul.f32 %v1325, %v1357
      %v1366 = vmul.f32 %v1326, %v1358
      %v1367 = vmul.f32 %v1327, %v1359
      %v1368 = vmul.f32 %v1328, %v1360
      %v1369 = vmul.f32 %v1329, %v1361
      %v1370 = vadd.f32 %v1362, -0.28449672
      %v1371 = vadd.f32 %v1363, -0.28449672
      %v1372 = vadd.f32 %v1364, -0.28449672
      %v1373 = vadd.f32 %v1365, -0.28449672
      %v1374 = vadd.f32 %v1366, -0.28449672
      %v1375 = vadd.f32 %v1367, -0.28449672
      %v1376 = vadd.f32 %v1368, -0.28449672
      %v1377 = vadd.f32 %v1369, -0.28449672
      %v1378 = vmul.f32 %v1322, %v1370
      %v1379 = vmul.f32 %v1323, %v1371
      %v1380 = vmul.f32 %v1324, %v1372
      %v1381 = vmul.f32 %v1325, %v1373
      %v1382 = vmul.f32 %v1326, %v1374
      %v1383 = vmul.f32 %v1327, %v1375
      %v1384 = vmul.f32 %v1328, %v1376
      %v1385 = vmul.f32 %v1329, %v1377
      %v1386 = vadd.f32 %v1378, 0.2548296
      %v1387 = vadd.f32 %v1379, 0.2548296
      %v1388 = vadd.f32 %v1380, 0.2548296
      %v1389 = vadd.f32 %v1381, 0.2548296
      %v1390 = vadd.f32 %v1382, 0.2548296
      %v1391 = vadd.f32 %v1383, 0.2548296
      %v1392 = vadd.f32 %v1384, 0.2548296
      %v1393 = vadd.f32 %v1385, 0.2548296
      %v1394 = vmul.f32 %v1322, %v1386
      %v1395 = vmul.f32 %v1323, %v1387
      %v1396 = vmul.f32 %v1324, %v1388
      %v1397 = vmul.f32 %v1325, %v1389
      %v1398 = vmul.f32 %v1326, %v1390
      %v1399 = vmul.f32 %v1327, %v1391
      %v1400 = vmul.f32 %v1328, %v1392
      %v1401 = vmul.f32 %v1329, %v1393
      %v1402 = vadd.f32 %v1274, %v1298
      %v1403 = vadd.f32 %v1275, %v1299
      %v1404 = vadd.f32 %v1276, %v1300
      %v1405 = vadd.f32 %v1277, %v1301
      %v1406 = vadd.f32 %v1278, %v1302
      %v1407 = vadd.f32 %v1279, %v1303
      %v1408 = vadd.f32 %v1280, %v1304
      %v1409 = vadd.f32 %v1281, %v1305
      %v1410 = vmul.f32 %v1402, 0.5
      %v1411 = vmul.f32 %v1403, 0.5
      %v1412 = vmul.f32 %v1404, 0.5
      %v1413 = vmul.f32 %v1405, 0.5
      %v1414 = vmul.f32 %v1406, 0.5
      %v1415 = vmul.f32 %v1407, 0.5
      %v1416 = vmul.f32 %v1408, 0.5
      %v1417 = vmul.f32 %v1409, 0.5
      %v1418 = vmul.f32 %v1298, 0.5
      %v1419 = vmul.f32 %v1299, 0.5
      %v1420 = vmul.f32 %v1300, 0.5
      %v1421 = vmul.f32 %v1301, 0.5
      %v1422 = vmul.f32 %v1302, 0.5
      %v1423 = vmul.f32 %v1303, 0.5
      %v1424 = vmul.f32 %v1304, 0.5
      %v1425 = vmul.f32 %v1305, 0.5
      %v1426 = vmul.f32 %v1290, %v1290
      %v1427 = vmul.f32 %v1291, %v1291
      %v1428 = vmul.f32 %v1292, %v1292
      %v1429 = vmul.f32 %v1293, %v1293
      %v1430 = vmul.f32 %v1294, %v1294
      %v1431 = vmul.f32 %v1295, %v1295
      %v1432 = vmul.f32 %v1296, %v1296
      %v1433 = vmul.f32 %v1297, %v1297
      %v1434 = vsub.f32 0.0, %v1426
      %v1435 = vsub.f32 0.0, %v1427
      %v1436 = vsub.f32 0.0, %v1428
      %v1437 = vsub.f32 0.0, %v1429
      %v1438 = vsub.f32 0.0, %v1430
      %v1439 = vsub.f32 0.0, %v1431
      %v1440 = vsub.f32 0.0, %v1432
      %v1441 = vsub.f32 0.0, %v1433
      %v1442 = vmul.f32 %v1434, 1.442695
      %v1443 = vpow.pop %v1442
      %v1444 = vmul.f32 %v1435, 1.442695
      %v1445 = vpow.pop %v1444
      %v1446 = vmul.f32 %v1436, 1.442695
      %v1447 = vpow.pop %v1446
      %v1448 = vmul.f32 %v1437, 1.442695
      %v1449 = vpow.pop %v1448
      %v1450 = vmul.f32 %v1438, 1.442695
      %v1451 = vpow.pop %v1450
      %v1452 = vmul.f32 %v1439, 1.442695
      %v1453 = vpow.pop %v1452
      %v1454 = vmul.f32 %v1440, 1.442695
      %v1455 = vpow.pop %v1454
      %v1456 = vmul.f32 %v1441, 1.442695
      %v1457 = vpow.pop %v1456
      %v1458 = vmul.f32 %v1394, %v1443
      %v1459 = vmul.f32 %v1395, %v1445
      %v1460 = vmul.f32 %v1396, %v1447
      %v1461 = vmul.f32 %v1397, %v1449
      %v1462 = vmul.f32 %v1398, %v1451
      %v1463 = vmul.f32 %v1399, %v1453
      %v1464 = vmul.f32 %v1400, %v1455
      %v1465 = vmul.f32 %v1401, %v1457
      %v1466 = vmul.f32 %v1418, %v1458
      %v1467 = vmul.f32 %v1419, %v1459
      %v1468 = vmul.f32 %v1420, %v1460
      %v1469 = vmul.f32 %v1421, %v1461
      %v1470 = vmul.f32 %v1422, %v1462
      %v1471 = vmul.f32 %v1423, %v1463
      %v1472 = vmul.f32 %v1424, %v1464
      %v1473 = vmul.f32 %v1425, %v1465
      %v1474 = vsub.f32 %v1410, %v1466
      %v1475 = vsub.f32 %v1411, %v1467
      %v1476 = vsub.f32 %v1412, %v1468
      %v1477 = vsub.f32 %v1413, %v1469
      %v1478 = vsub.f32 %v1414, %v1470
      %v1479 = vsub.f32 %v1415, %v1471
      %v1480 = vsub.f32 %v1416, %v1472
      %v1481 = vsub.f32 %v1417, %v1473
      %v1482 = vld [vmem:[%s7] sm:$0xff]
      %v1483 = vld [vmem:[%s7 + $0x8] sm:$0xff]
      %v1484 = vld [vmem:[%s8] sm:$0x1]
      %v1486 = vlaneseq
      %v1487 = vshrl.u32 %v1486, 7
      %v1488 = vsub.s32 0, %v1487
      %v1489 = vrot.slane %v1484, %v1488
      %vm1491 = vcmask 130048
      %v1493 = vsel %vm1491, %v1474, 0
      %v1496 = vsel %vm1491, %v1475, 0
      %v1499 = vsel %vm1491, %v1476, 0
      %v1502 = vsel %vm1491, %v1477, 0
      %v1505 = vsel %vm1491, %v1478, 0
      %v1508 = vsel %vm1491, %v1479, 0
      %v1511 = vsel %vm1491, %v1480, 0
      %v1514 = vsel %vm1491, %v1481, 0
      %1516 = vmatprep.subr.mxu0 0.0
      %1517 = vmatpush1.msra.mxu0 0.0
      %1518 = vmatprep.subr.mxu0 0.0
      %1519 = vmatpush1.msra.mxu0 0.0
      %1520 = vmatprep.subr.mxu0 0.0
      %1521 = vmatpush1.msra.mxu0 0.0
      %1522 = vmatprep.subr.mxu0 0.0
      %1523 = vmatpush1.msra.mxu0 0.0
      %1524 = vmatprep.subr.mxu0 0.0
      %1525 = vmatpush1.msra.mxu0 0.0
      %1526 = vmatprep.subr.mxu0 0.0
      %1527 = vmatpush1.msra.mxu0 0.0
      %1528 = vmatprep.subr.mxu0 0.0
      %1529 = vmatpush1.msra.mxu0 0.0
      %1530 = vmatprep.subr.mxu0 0.0
      %1531 = vmatpush1.msra.mxu0 0.0
      %1532 = vmatprep.subr.mxu0 0.0
      %1533 = vmatpush1.msra.mxu0 0.0
      %1534 = vmatprep.subr.mxu0 0.0
      %1535 = vmatpush1.msra.mxu0 0.0
      %1536 = vmatprep.subr.mxu0 0.0
      %1537 = vmatpush1.msra.mxu0 0.0
      %1538 = vmatprep.subr.mxu0 0.0
      %1539 = vmatpush1.msra.mxu0 0.0
      %1540 = vmatprep.subr.mxu0 0.0
      %1541 = vmatpush1.msra.mxu0 0.0
      %1542 = vmatprep.subr.mxu0 0.0
      %1543 = vmatpush1.msra.mxu0 0.0
      %1544 = vmatprep.subr.mxu0 0.0
      %1545 = vmatpush1.msra.mxu0 %v1483
      %1546 = vmatprep.subr.mxu0 0.0
      %1547 = vmatpush1.msra.mxu0 %v1482
      %1548 = vmatprep.subr.mxu0 0.0
      %1549 = vmatpush2.msra.mxu0 0.0
      %1550 = vmatprep.subr.mxu0 0.0
      %1551 = vmatpush2.msra.mxu0 0.0
      %1552 = vmatprep.subr.mxu0 0.0
      %1553 = vmatpush2.msra.mxu0 0.0
      %1554 = vmatprep.subr.mxu0 0.0
      %1555 = vmatpush2.msra.mxu0 0.0
      %1556 = vmatprep.subr.mxu0 0.0
      %1557 = vmatpush2.msra.mxu0 0.0
      %1558 = vmatprep.subr.mxu0 0.0
      %1559 = vmatpush2.msra.mxu0 0.0
      %1560 = vmatprep.subr.mxu0 0.0
      %1561 = vmatpush2.msra.mxu0 0.0
      %1562 = vmatprep.subr.mxu0 0.0
      %1563 = vmatpush2.msra.mxu0 0.0
      %1564 = vmatprep.subr.mxu0 0.0
      %1565 = vmatpush2.msra.mxu0 0.0
      %1566 = vmatprep.subr.mxu0 0.0
      %1567 = vmatpush2.msra.mxu0 0.0
      %1568 = vmatprep.subr.mxu0 0.0
      %1569 = vmatpush2.msra.mxu0 0.0
      %1570 = vmatprep.subr.mxu0 0.0
      %1571 = vmatpush2.msra.mxu0 0.0
      %1572 = vmatprep.subr.mxu0 0.0
      %1573 = vmatpush2.msra.mxu0 0.0
      %1574 = vmatprep.subr.mxu0 0.0
      %1575 = vmatpush2.msra.mxu0 0.0
      %1576 = vmatprep.subr.mxu0 0.0
      %1577 = vmatpush2.msra.mxu0 0.0
      %1578 = vmatprep.subr.mxu0 0.0
      %1579 = vmatpush2.msra.mxu0 0.0
      %1580 = vmatprep.mubr.f32.mxu0 0.0
      %1581 = vmatmul.mubr.f32.gmra.mxu0 %v1493
      %v1582 = vpop.f32.mrf.mxu0
      %v1583 = vadd.f32 %v1489, %v1582
      %v1584 = vpop.f32.mrf.mxu0
      %1585 = vmatprep.mubr.f32.mxu0 0.0
      %1586 = vmatmul.mubr.f32.gmra.mxu0 %v1496
      %v1587 = vpop.f32.mrf.mxu0
      %v1588 = vadd.f32 %v1489, %v1587
      %v1589 = vpop.f32.mrf.mxu0
      %1590 = vmatprep.mubr.f32.mxu0 0.0
      %1591 = vmatmul.mubr.f32.gmra.mxu0 %v1499
      %v1592 = vpop.f32.mrf.mxu0
      %v1593 = vadd.f32 %v1489, %v1592
      %v1594 = vpop.f32.mrf.mxu0
      %1595 = vmatprep.mubr.f32.mxu0 0.0
      %1596 = vmatmul.mubr.f32.gmra.mxu0 %v1502
      %v1597 = vpop.f32.mrf.mxu0
      %v1598 = vadd.f32 %v1489, %v1597
      %v1599 = vpop.f32.mrf.mxu0
      %1600 = vmatprep.mubr.f32.mxu0 0.0
      %1601 = vmatmul.mubr.f32.gmra.mxu0 %v1505
      %v1602 = vpop.f32.mrf.mxu0
      %v1603 = vadd.f32 %v1489, %v1602
      %v1604 = vpop.f32.mrf.mxu0
      %1605 = vmatprep.mubr.f32.mxu0 0.0
      %1606 = vmatmul.mubr.f32.gmra.mxu0 %v1508
      %v1607 = vpop.f32.mrf.mxu0
      %v1608 = vadd.f32 %v1489, %v1607
      %v1609 = vpop.f32.mrf.mxu0
      %1610 = vmatprep.mubr.f32.mxu0 0.0
      %1611 = vmatmul.mubr.f32.gmra.mxu0 %v1511
      %v1612 = vpop.f32.mrf.mxu0
      %v1613 = vadd.f32 %v1489, %v1612
      %v1614 = vpop.f32.mrf.mxu0
      %1615 = vmatprep.mubr.f32.mxu0 0.0
      %1616 = vmatmul.mubr.f32.gmra.mxu0 %v1514
      %v1617 = vpop.f32.mrf.mxu0
      %v1618 = vadd.f32 %v1489, %v1617
      %v1619 = vpop.f32.mrf.mxu0
      %1620 = vdwg.mxu0
      %1621 = vst.msk [vmem:[%s498] sm:$0xff] %vm520, %v1583
      %1622 = vst.msk [vmem:[%s498 + $0x8] sm:$0xff] %vm520, %v1588
      %1623 = vst.msk [vmem:[%s498 + $0x10] sm:$0xff] %vm520, %v1593
      %1624 = vst.msk [vmem:[%s498 + $0x18] sm:$0xff] %vm520, %v1598
      %1625 = vst.msk [vmem:[%s498 + $0x20] sm:$0xff] %vm520, %v1603
      %1626 = vst.msk [vmem:[%s498 + $0x28] sm:$0xff] %vm520, %v1608
      %1627 = vst.msk [vmem:[%s498 + $0x30] sm:$0xff] %vm520, %v1613
      %1628 = vst.msk [vmem:[%s498 + $0x38] sm:$0xff] %vm520, %v1618
      %s1629 = smul.u32 8, %s25
      %p1630 = scmp.lt.s32.totalorder %s24, 1
      %s1631 = scalar_select %p1630, %s24, 1
      %p1632 = scmp.lt.s32.totalorder %s1629, 31
      %s1633 = scalar_select %p1632, %s1629, 31
      %s1634 = smul.addr %s1631, 32
      %s1635 = sadd.s32 %s1633, %s1634
      %s1636 = smul.addr %s1635, 8
      %s1637 = scalar_lea.vmem %s9, %s1636
      // Predicated region
      $region57: #{tpu_custom_call.1} parent=55 // pred_check
        %p1638 = pneg %p278
      $region58: #{tpu_custom_call.1} parent=55 // pred_check_branch
        %1640 = sbr.rel (%p1638) target = $region60
      $region59: #{tpu_custom_call.1} parent=55 // pred_region
        %s1641 = smul.u32 8, %s25
      $region60: #{tpu_custom_call.1} parent=55 // pred_fallthru
        _
    $region56: #{tpu_custom_call.1} parent=5 // pred_fallthru
      _
    %p1642 = scmp.le.s32.totalorder 2, %s15
    // Predicated region
    $region61: #{tpu_custom_call.1} parent=5 // pred_check
      %p1643 = pneg %p1642
    $region62: #{tpu_custom_call.1} parent=5 // pred_check_branch
      %1645 = sbr.rel (%p1643) target = $region64
    $region63: #{tpu_custom_call.1} parent=5 // pred_region
      %s1646 = ssub.s32 %s15, 2
      // Predicated region
      $region65: #{tpu_custom_call.1} parent=63 // pred_check
        %p1647 = pneg %p284
      $region66: #{tpu_custom_call.1} parent=63 // pred_check_branch
        %1649 = sbr.rel (%p1647) target = $region68
      $region67: #{tpu_custom_call.1} parent=63 // pred_region
        %s1650 = smul.u32 8, %s27
        %p1651 = scmp.lt.s32.totalorder %s26, 1
        %s1652 = scalar_select %p1651, %s26, 1
        %p1653 = scmp.lt.s32.totalorder %s1650, 31
        %s1654 = scalar_select %p1653, %s1650, 31
        %s1655 = smul.addr %s1652, 32
        %s1656 = sadd.s32 %s1654, %s1655
        %s1657 = smul.addr %s1656, 8
        %s1658 = scalar_lea.vmem %s9, %s1657
      $region68: #{tpu_custom_call.1} parent=63 // pred_fallthru
        _
    $region64: #{tpu_custom_call.1} parent=5 // pred_fallthru
      _
  $region6: #{tpu_custom_call.1} parent=0 // loop_footer
    %s19 = sadd.s32 1, %s15
  $region7: #{tpu_custom_call.1} parent=0 // loop_footer_branch
    %14 = sbr.rel target = $region3
  $region8: #{tpu_custom_call.1} parent=0 // loop_exit
    _

</llo_original>
